<compile_context>
chip_gen: v5e
topology: v5e:2x2
jax: 0.10.0
libtpu: 0.0.40
codegen_flags: <defaults>
</compile_context>

<pallas_src>
import functools

import jax
import jax.numpy as jnp
from jax.experimental import pallas as pl
from jax.experimental.pallas import tpu as pltpu


def _upsample_sc_kernel(x_ref, f_ref, w_ref, b_ref, o_ref, *, stride):
    # x_ref: (B, Cin, H, W)        VMEM  input activations (batch tile)
    # f_ref: (B, Cf, Ho, Wo)       VMEM  skip feature map (passthrough)
    # w_ref: (Cout, Cin)           SMEM  1x1 transposed-conv weight (out-major)
    # b_ref: (Cout,)               SMEM  bias
    # o_ref: (B, Cout+Cf, Ho, Wo)  VMEM  fused output block
    B, Cin, H, W = x_ref.shape
    _, Cf, Ho, Wo = f_ref.shape
    Cout = w_ref.shape[0]
    odt = o_ref.dtype

    x = x_ref[...].astype(jnp.float32)                       # (B, Cin, H, W)

    # ---- 1x1 channel mix on the VPU (Cin/Cout tiny; MXU would idle) --------
    planes = []
    for co in range(Cout):                                    # static unroll
        acc = x[:, 0:1] * w_ref[co, 0]
        for ci in range(1, Cin):
            acc = acc + x[:, ci:ci + 1] * w_ref[co, ci]
        planes.append(acc)                                    # (B, 1, H, W)
    y = jnp.concatenate(planes, axis=1)                       # (B, Cout, H, W)

    # ---- width (lane-axis) expansion as a small MXU matmul ------------------
    # Cm[w, ow] = 1 iff ow == stride*w; generated on the fly (a few VPU
    # compares) instead of being an HBM input.
    w_idx = jax.lax.broadcasted_iota(jnp.int32, (W, Wo), 0)
    ow_idx = jax.lax.broadcasted_iota(jnp.int32, (W, Wo), 1)
    cm = (ow_idx == stride * w_idx).astype(jnp.float32)       # (W, Wo)

    # Collapsing (B, Cout, H) into the matmul M dim is a free relabel when
    # H % 8 == 0 (sublane-tile aligned); otherwise Mosaic relayouts it.
    t = jnp.dot(y.reshape(B * Cout * H, W), cm,
                preferred_element_type=jnp.float32)           # (B*Cout*H, Wo)
    t = t.reshape(B, Cout, H, Wo)

    # ---- bias ---------------------------------------------------------------
    bias_col = jnp.concatenate(
        [jnp.full((1, 1, 1, 1), b_ref[co], jnp.float32) for co in range(Cout)],
        axis=1)                                               # (1, Cout, 1, 1)

    # ---- stores -------------------------------------------------------------
    # ConvTranspose2d adds the bias everywhere (including the stride gaps):
    # fill the conv channels with bias, then overwrite the stride-hit rows
    # (within a hit row, non-hit columns already got 0 from Cm, i.e. bias only).
    o_ref[:, 0:Cout, :, :] = jnp.broadcast_to(
        bias_col, (B, Cout, Ho, Wo)).astype(odt)

    tb = (t + bias_col).astype(odt)                           # (B, Cout, H, Wo)
    for h in range(H):                                        # static unroll
        r = stride * h
        o_ref[:, 0:Cout, r:r + 1, :] = tb[:, :, h:h + 1, :]

    # Skip-connection passthrough (channel concat).
    o_ref[:, Cout:Cout + Cf, :, :] = f_ref[...].astype(odt)


def _pick_batch_tile(n, max_tile=8):
    for t in range(min(n, max_tile), 0, -1):
        if n % t == 0:
            return t
    return 1


def my_upsampling_sc(x, feature_map, weight, bias, *, stride=2, batch_tile=None):
    """Equivalent of My_UpSampling_SC.forward.

    x:           (N, Cin, H, W)          NCHW
    feature_map: (N, Cf, Ho, Wo)         NCHW, Ho = (H-1)*stride+1, Wo likewise
    weight:      (Cin, Cout)             ConvTranspose2d 1x1 weight, squeezed
    bias:        (Cout,)
    returns:     (N, Cout + Cf, Ho, Wo)  NCHW
    """
    N, Cin, H, W = x.shape
    Nf, Cf, Ho, Wo = feature_map.shape
    assert Nf == N
    Cout = weight.shape[1]
    assert Ho == (H - 1) * stride + 1 and Wo == (W - 1) * stride + 1
    Ctot = Cout + Cf
    out_dtype = jnp.result_type(x.dtype, feature_map.dtype)

    if batch_tile is None:
        batch_tile = _pick_batch_tile(N)
    assert N % batch_tile == 0
    grid = (N // batch_tile,)

    w_oc = jnp.transpose(jnp.asarray(weight, jnp.float32))    # (Cout, Cin) SMEM
    b_v = jnp.asarray(bias, jnp.float32)                      # (Cout,)     SMEM

    # VMEM budget from the actual (double-buffered) block sizes, clamped so it
    # is valid on every generation (v7x physical VMEM is 64 MiB).
    blk_bytes = 4 * batch_tile * (Cin * H * W + Cf * Ho * Wo + Ctot * Ho * Wo)
    vmem_limit = int(min(48 * 1024 * 1024, max(16 * 1024 * 1024, 4 * blk_bytes)))

    kernel = functools.partial(_upsample_sc_kernel, stride=stride)

    return pl.pallas_call(
        kernel,
        out_shape=jax.ShapeDtypeStruct((N, Ctot, Ho, Wo), out_dtype),
        grid_spec=pltpu.PrefetchScalarGridSpec(
            num_scalar_prefetch=0,
            grid=grid,
            in_specs=[
                pl.BlockSpec((batch_tile, Cin, H, W), lambda n: (n, 0, 0, 0)),
                pl.BlockSpec((batch_tile, Cf, Ho, Wo), lambda n: (n, 0, 0, 0)),
                pl.BlockSpec(memory_space=pltpu.MemorySpace.SMEM),  # weight
                pl.BlockSpec(memory_space=pltpu.MemorySpace.SMEM),  # bias
            ],
            out_specs=pl.BlockSpec((batch_tile, Ctot, Ho, Wo),
                                   lambda n: (n, 0, 0, 0)),
        ),
        compiler_params=pltpu.CompilerParams(
            dimension_semantics=("parallel",),   # shard batch steps across TCs
            vmem_limit_bytes=vmem_limit,
        ),
    )(x, feature_map, w_oc, b_v)


if __name__ == "__main__":
    key = jax.random.PRNGKey(0)
    k_x, k_f, k_w, k_b = jax.random.split(key, 4)

    N, Cin, H, W = 2, 4, 16, 16
    Cout, Cf = 6, 3
    stride = 2
    Ho = (H - 1) * stride + 1
    Wo = (W - 1) * stride + 1

    x = jax.random.normal(k_x, (N, Cin, H, W), dtype=jnp.float32)
    feature_map = jax.random.normal(k_f, (N, Cf, Ho, Wo), dtype=jnp.float32)

    # ConvTranspose2d weight (Cin, Cout, 1, 1) squeezed to (Cin, Cout).
    weight = (jax.random.normal(k_w, (Cin, Cout), dtype=jnp.float32)
              * (1.0 / jnp.sqrt(Cin)))
    bias = jax.random.normal(k_b, (Cout,), dtype=jnp.float32) * 0.1

    out = my_upsampling_sc(x, feature_map, weight, bias, stride=stride)
    out = jax.block_until_ready(out)

    # Pure-JAX reference for ConvTranspose2d(k=1, stride=2, pad=0) + concat.
    y_ref = jnp.einsum("nchw,cd->ndhw", x, weight) + bias.reshape(1, Cout, 1, 1)
    up_ref = jnp.broadcast_to(bias.reshape(1, Cout, 1, 1),
                              (N, Cout, Ho, Wo)).astype(jnp.float32)
    up_ref = up_ref.at[:, :, ::stride, ::stride].set(y_ref)
    ref = jnp.concatenate((up_ref, feature_map), axis=1)

    assert out.shape == (N, Cout + Cf, Ho, Wo), out.shape
    assert jnp.allclose(out, ref, atol=1e-5, rtol=1e-5)
    print("KERNEL_OK")
</pallas_src>

<mosaic_0001>
module attributes {stable_mosaic.version = 11 : i64} {
  func.func @_upsample_sc_kernel(%arg0: i32, %arg1: memref<2x4x16x16xf32, #tpu.memory_space<vmem>>, %arg2: memref<2x3x31x31xf32, #tpu.memory_space<vmem>>, %arg3: memref<6x4xf32, #tpu.memory_space<smem>>, %arg4: memref<6xf32, #tpu.memory_space<smem>>, %arg5: memref<2x9x31x31xf32, #tpu.memory_space<vmem>>) attributes {dimension_semantics = [#tpu.dimension_semantics<parallel>], iteration_bounds = array<i64: 1>, scalar_prefetch = 0 : i64, scratch_operands = 0 : i64, tpu.core_type = #tpu.core_type<tc>, window_params = [{transform_indices = @transform_0, window_bounds = array<i64: 2, 4, 16, 16>}, {transform_indices = @transform_1, window_bounds = array<i64: 2, 3, 31, 31>}, {transform_indices = @transform_2, window_bounds = array<i64: 6, 4>}, {transform_indices = @transform_3, window_bounds = array<i64: 6>}, {transform_indices = @transform_4, window_bounds = array<i64: 2, 9, 31, 31>}]} {
    %c0 = arith.constant 0 : index
    %c0_0 = arith.constant 0 : index
    %c0_1 = arith.constant 0 : index
    %c0_2 = arith.constant 0 : index
    %0 = vector.load %arg1[%c0, %c0_0, %c0_1, %c0_2] : memref<2x4x16x16xf32, #tpu.memory_space<vmem>>, vector<2x4x16x16xf32>
    %1 = vector.extract_strided_slice %0 {offsets = [0, 0, 0, 0], sizes = [2, 1, 16, 16], strides = [1, 1, 1, 1]} : vector<2x4x16x16xf32> to vector<2x1x16x16xf32>
    %c0_3 = arith.constant 0 : index
    %c0_4 = arith.constant 0 : index
    %2 = memref.load %arg3[%c0_3, %c0_4] : memref<6x4xf32, #tpu.memory_space<smem>>
    %3 = vector.broadcast %2 : f32 to vector<2x1x16x16xf32>
    %4 = arith.mulf %1, %3 : vector<2x1x16x16xf32>
    %5 = vector.extract_strided_slice %0 {offsets = [0, 1, 0, 0], sizes = [2, 1, 16, 16], strides = [1, 1, 1, 1]} : vector<2x4x16x16xf32> to vector<2x1x16x16xf32>
    %c0_5 = arith.constant 0 : index
    %c1 = arith.constant 1 : index
    %6 = memref.load %arg3[%c0_5, %c1] : memref<6x4xf32, #tpu.memory_space<smem>>
    %7 = vector.broadcast %6 : f32 to vector<2x1x16x16xf32>
    %8 = arith.mulf %5, %7 : vector<2x1x16x16xf32>
    %9 = arith.addf %4, %8 : vector<2x1x16x16xf32>
    %10 = vector.extract_strided_slice %0 {offsets = [0, 2, 0, 0], sizes = [2, 1, 16, 16], strides = [1, 1, 1, 1]} : vector<2x4x16x16xf32> to vector<2x1x16x16xf32>
    %c0_6 = arith.constant 0 : index
    %c2 = arith.constant 2 : index
    %11 = memref.load %arg3[%c0_6, %c2] : memref<6x4xf32, #tpu.memory_space<smem>>
    %12 = vector.broadcast %11 : f32 to vector<2x1x16x16xf32>
    %13 = arith.mulf %10, %12 : vector<2x1x16x16xf32>
    %14 = arith.addf %9, %13 : vector<2x1x16x16xf32>
    %15 = vector.extract_strided_slice %0 {offsets = [0, 3, 0, 0], sizes = [2, 1, 16, 16], strides = [1, 1, 1, 1]} : vector<2x4x16x16xf32> to vector<2x1x16x16xf32>
    %c0_7 = arith.constant 0 : index
    %c3 = arith.constant 3 : index
    %16 = memref.load %arg3[%c0_7, %c3] : memref<6x4xf32, #tpu.memory_space<smem>>
    %17 = vector.broadcast %16 : f32 to vector<2x1x16x16xf32>
    %18 = arith.mulf %15, %17 : vector<2x1x16x16xf32>
    %19 = arith.addf %14, %18 : vector<2x1x16x16xf32>
    %20 = vector.extract_strided_slice %0 {offsets = [0, 0, 0, 0], sizes = [2, 1, 16, 16], strides = [1, 1, 1, 1]} : vector<2x4x16x16xf32> to vector<2x1x16x16xf32>
    %c1_8 = arith.constant 1 : index
    %c0_9 = arith.constant 0 : index
    %21 = memref.load %arg3[%c1_8, %c0_9] : memref<6x4xf32, #tpu.memory_space<smem>>
    %22 = vector.broadcast %21 : f32 to vector<2x1x16x16xf32>
    %23 = arith.mulf %20, %22 : vector<2x1x16x16xf32>
    %24 = vector.extract_strided_slice %0 {offsets = [0, 1, 0, 0], sizes = [2, 1, 16, 16], strides = [1, 1, 1, 1]} : vector<2x4x16x16xf32> to vector<2x1x16x16xf32>
    %c1_10 = arith.constant 1 : index
    %c1_11 = arith.constant 1 : index
    %25 = memref.load %arg3[%c1_10, %c1_11] : memref<6x4xf32, #tpu.memory_space<smem>>
    %26 = vector.broadcast %25 : f32 to vector<2x1x16x16xf32>
    %27 = arith.mulf %24, %26 : vector<2x1x16x16xf32>
    %28 = arith.addf %23, %27 : vector<2x1x16x16xf32>
    %29 = vector.extract_strided_slice %0 {offsets = [0, 2, 0, 0], sizes = [2, 1, 16, 16], strides = [1, 1, 1, 1]} : vector<2x4x16x16xf32> to vector<2x1x16x16xf32>
    %c1_12 = arith.constant 1 : index
    %c2_13 = arith.constant 2 : index
    %30 = memref.load %arg3[%c1_12, %c2_13] : memref<6x4xf32, #tpu.memory_space<smem>>
    %31 = vector.broadcast %30 : f32 to vector<2x1x16x16xf32>
    %32 = arith.mulf %29, %31 : vector<2x1x16x16xf32>
    %33 = arith.addf %28, %32 : vector<2x1x16x16xf32>
    %34 = vector.extract_strided_slice %0 {offsets = [0, 3, 0, 0], sizes = [2, 1, 16, 16], strides = [1, 1, 1, 1]} : vector<2x4x16x16xf32> to vector<2x1x16x16xf32>
    %c1_14 = arith.constant 1 : index
    %c3_15 = arith.constant 3 : index
    %35 = memref.load %arg3[%c1_14, %c3_15] : memref<6x4xf32, #tpu.memory_space<smem>>
    %36 = vector.broadcast %35 : f32 to vector<2x1x16x16xf32>
    %37 = arith.mulf %34, %36 : vector<2x1x16x16xf32>
    %38 = arith.addf %33, %37 : vector<2x1x16x16xf32>
    %39 = vector.extract_strided_slice %0 {offsets = [0, 0, 0, 0], sizes = [2, 1, 16, 16], strides = [1, 1, 1, 1]} : vector<2x4x16x16xf32> to vector<2x1x16x16xf32>
    %c2_16 = arith.constant 2 : index
    %c0_17 = arith.constant 0 : index
    %40 = memref.load %arg3[%c2_16, %c0_17] : memref<6x4xf32, #tpu.memory_space<smem>>
    %41 = vector.broadcast %40 : f32 to vector<2x1x16x16xf32>
    %42 = arith.mulf %39, %41 : vector<2x1x16x16xf32>
    %43 = vector.extract_strided_slice %0 {offsets = [0, 1, 0, 0], sizes = [2, 1, 16, 16], strides = [1, 1, 1, 1]} : vector<2x4x16x16xf32> to vector<2x1x16x16xf32>
    %c2_18 = arith.constant 2 : index
    %c1_19 = arith.constant 1 : index
    %44 = memref.load %arg3[%c2_18, %c1_19] : memref<6x4xf32, #tpu.memory_space<smem>>
    %45 = vector.broadcast %44 : f32 to vector<2x1x16x16xf32>
    %46 = arith.mulf %43, %45 : vector<2x1x16x16xf32>
    %47 = arith.addf %42, %46 : vector<2x1x16x16xf32>
    %48 = vector.extract_strided_slice %0 {offsets = [0, 2, 0, 0], sizes = [2, 1, 16, 16], strides = [1, 1, 1, 1]} : vector<2x4x16x16xf32> to vector<2x1x16x16xf32>
    %c2_20 = arith.constant 2 : index
    %c2_21 = arith.constant 2 : index
    %49 = memref.load %arg3[%c2_20, %c2_21] : memref<6x4xf32, #tpu.memory_space<smem>>
    %50 = vector.broadcast %49 : f32 to vector<2x1x16x16xf32>
    %51 = arith.mulf %48, %50 : vector<2x1x16x16xf32>
    %52 = arith.addf %47, %51 : vector<2x1x16x16xf32>
    %53 = vector.extract_strided_slice %0 {offsets = [0, 3, 0, 0], sizes = [2, 1, 16, 16], strides = [1, 1, 1, 1]} : vector<2x4x16x16xf32> to vector<2x1x16x16xf32>
    %c2_22 = arith.constant 2 : index
    %c3_23 = arith.constant 3 : index
    %54 = memref.load %arg3[%c2_22, %c3_23] : memref<6x4xf32, #tpu.memory_space<smem>>
    %55 = vector.broadcast %54 : f32 to vector<2x1x16x16xf32>
    %56 = arith.mulf %53, %55 : vector<2x1x16x16xf32>
    %57 = arith.addf %52, %56 : vector<2x1x16x16xf32>
    %58 = vector.extract_strided_slice %0 {offsets = [0, 0, 0, 0], sizes = [2, 1, 16, 16], strides = [1, 1, 1, 1]} : vector<2x4x16x16xf32> to vector<2x1x16x16xf32>
    %c3_24 = arith.constant 3 : index
    %c0_25 = arith.constant 0 : index
    %59 = memref.load %arg3[%c3_24, %c0_25] : memref<6x4xf32, #tpu.memory_space<smem>>
    %60 = vector.broadcast %59 : f32 to vector<2x1x16x16xf32>
    %61 = arith.mulf %58, %60 : vector<2x1x16x16xf32>
    %62 = vector.extract_strided_slice %0 {offsets = [0, 1, 0, 0], sizes = [2, 1, 16, 16], strides = [1, 1, 1, 1]} : vector<2x4x16x16xf32> to vector<2x1x16x16xf32>
    %c3_26 = arith.constant 3 : index
    %c1_27 = arith.constant 1 : index
    %63 = memref.load %arg3[%c3_26, %c1_27] : memref<6x4xf32, #tpu.memory_space<smem>>
    %64 = vector.broadcast %63 : f32 to vector<2x1x16x16xf32>
    %65 = arith.mulf %62, %64 : vector<2x1x16x16xf32>
    %66 = arith.addf %61, %65 : vector<2x1x16x16xf32>
    %67 = vector.extract_strided_slice %0 {offsets = [0, 2, 0, 0], sizes = [2, 1, 16, 16], strides = [1, 1, 1, 1]} : vector<2x4x16x16xf32> to vector<2x1x16x16xf32>
    %c3_28 = arith.constant 3 : index
    %c2_29 = arith.constant 2 : index
    %68 = memref.load %arg3[%c3_28, %c2_29] : memref<6x4xf32, #tpu.memory_space<smem>>
    %69 = vector.broadcast %68 : f32 to vector<2x1x16x16xf32>
    %70 = arith.mulf %67, %69 : vector<2x1x16x16xf32>
    %71 = arith.addf %66, %70 : vector<2x1x16x16xf32>
    %72 = vector.extract_strided_slice %0 {offsets = [0, 3, 0, 0], sizes = [2, 1, 16, 16], strides = [1, 1, 1, 1]} : vector<2x4x16x16xf32> to vector<2x1x16x16xf32>
    %c3_30 = arith.constant 3 : index
    %c3_31 = arith.constant 3 : index
    %73 = memref.load %arg3[%c3_30, %c3_31] : memref<6x4xf32, #tpu.memory_space<smem>>
    %74 = vector.broadcast %73 : f32 to vector<2x1x16x16xf32>
    %75 = arith.mulf %72, %74 : vector<2x1x16x16xf32>
    %76 = arith.addf %71, %75 : vector<2x1x16x16xf32>
    %77 = vector.extract_strided_slice %0 {offsets = [0, 0, 0, 0], sizes = [2, 1, 16, 16], strides = [1, 1, 1, 1]} : vector<2x4x16x16xf32> to vector<2x1x16x16xf32>
    %c4 = arith.constant 4 : index
    %c0_32 = arith.constant 0 : index
    %78 = memref.load %arg3[%c4, %c0_32] : memref<6x4xf32, #tpu.memory_space<smem>>
    %79 = vector.broadcast %78 : f32 to vector<2x1x16x16xf32>
    %80 = arith.mulf %77, %79 : vector<2x1x16x16xf32>
    %81 = vector.extract_strided_slice %0 {offsets = [0, 1, 0, 0], sizes = [2, 1, 16, 16], strides = [1, 1, 1, 1]} : vector<2x4x16x16xf32> to vector<2x1x16x16xf32>
    %c4_33 = arith.constant 4 : index
    %c1_34 = arith.constant 1 : index
    %82 = memref.load %arg3[%c4_33, %c1_34] : memref<6x4xf32, #tpu.memory_space<smem>>
    %83 = vector.broadcast %82 : f32 to vector<2x1x16x16xf32>
    %84 = arith.mulf %81, %83 : vector<2x1x16x16xf32>
    %85 = arith.addf %80, %84 : vector<2x1x16x16xf32>
    %86 = vector.extract_strided_slice %0 {offsets = [0, 2, 0, 0], sizes = [2, 1, 16, 16], strides = [1, 1, 1, 1]} : vector<2x4x16x16xf32> to vector<2x1x16x16xf32>
    %c4_35 = arith.constant 4 : index
    %c2_36 = arith.constant 2 : index
    %87 = memref.load %arg3[%c4_35, %c2_36] : memref<6x4xf32, #tpu.memory_space<smem>>
    %88 = vector.broadcast %87 : f32 to vector<2x1x16x16xf32>
    %89 = arith.mulf %86, %88 : vector<2x1x16x16xf32>
    %90 = arith.addf %85, %89 : vector<2x1x16x16xf32>
    %91 = vector.extract_strided_slice %0 {offsets = [0, 3, 0, 0], sizes = [2, 1, 16, 16], strides = [1, 1, 1, 1]} : vector<2x4x16x16xf32> to vector<2x1x16x16xf32>
    %c4_37 = arith.constant 4 : index
    %c3_38 = arith.constant 3 : index
    %92 = memref.load %arg3[%c4_37, %c3_38] : memref<6x4xf32, #tpu.memory_space<smem>>
    %93 = vector.broadcast %92 : f32 to vector<2x1x16x16xf32>
    %94 = arith.mulf %91, %93 : vector<2x1x16x16xf32>
    %95 = arith.addf %90, %94 : vector<2x1x16x16xf32>
    %96 = vector.extract_strided_slice %0 {offsets = [0, 0, 0, 0], sizes = [2, 1, 16, 16], strides = [1, 1, 1, 1]} : vector<2x4x16x16xf32> to vector<2x1x16x16xf32>
    %c5 = arith.constant 5 : index
    %c0_39 = arith.constant 0 : index
    %97 = memref.load %arg3[%c5, %c0_39] : memref<6x4xf32, #tpu.memory_space<smem>>
    %98 = vector.broadcast %97 : f32 to vector<2x1x16x16xf32>
    %99 = arith.mulf %96, %98 : vector<2x1x16x16xf32>
    %100 = vector.extract_strided_slice %0 {offsets = [0, 1, 0, 0], sizes = [2, 1, 16, 16], strides = [1, 1, 1, 1]} : vector<2x4x16x16xf32> to vector<2x1x16x16xf32>
    %c5_40 = arith.constant 5 : index
    %c1_41 = arith.constant 1 : index
    %101 = memref.load %arg3[%c5_40, %c1_41] : memref<6x4xf32, #tpu.memory_space<smem>>
    %102 = vector.broadcast %101 : f32 to vector<2x1x16x16xf32>
    %103 = arith.mulf %100, %102 : vector<2x1x16x16xf32>
    %104 = arith.addf %99, %103 : vector<2x1x16x16xf32>
    %105 = vector.extract_strided_slice %0 {offsets = [0, 2, 0, 0], sizes = [2, 1, 16, 16], strides = [1, 1, 1, 1]} : vector<2x4x16x16xf32> to vector<2x1x16x16xf32>
    %c5_42 = arith.constant 5 : index
    %c2_43 = arith.constant 2 : index
    %106 = memref.load %arg3[%c5_42, %c2_43] : memref<6x4xf32, #tpu.memory_space<smem>>
    %107 = vector.broadcast %106 : f32 to vector<2x1x16x16xf32>
    %108 = arith.mulf %105, %107 : vector<2x1x16x16xf32>
    %109 = arith.addf %104, %108 : vector<2x1x16x16xf32>
    %110 = vector.extract_strided_slice %0 {offsets = [0, 3, 0, 0], sizes = [2, 1, 16, 16], strides = [1, 1, 1, 1]} : vector<2x4x16x16xf32> to vector<2x1x16x16xf32>
    %c5_44 = arith.constant 5 : index
    %c3_45 = arith.constant 3 : index
    %111 = memref.load %arg3[%c5_44, %c3_45] : memref<6x4xf32, #tpu.memory_space<smem>>
    %112 = vector.broadcast %111 : f32 to vector<2x1x16x16xf32>
    %113 = arith.mulf %110, %112 : vector<2x1x16x16xf32>
    %114 = arith.addf %109, %113 : vector<2x1x16x16xf32>
    %115 = tpu.concatenate %19, %38, %57, %76, %95, %114 in 1 : vector<2x1x16x16xf32>, vector<2x1x16x16xf32>, vector<2x1x16x16xf32>, vector<2x1x16x16xf32>, vector<2x1x16x16xf32>, vector<2x1x16x16xf32> -> vector<2x6x16x16xf32>
    %116 = tpu.iota {dimensions = array<i32: 0>} : vector<16x31xi32>
    %117 = tpu.iota {dimensions = array<i32: 1>} : vector<16x31xi32>
    %c2_i32 = arith.constant 2 : i32
    %118 = vector.broadcast %c2_i32 : i32 to vector<16x31xi32>
    %119 = arith.muli %118, %116 : vector<16x31xi32>
    %120 = arith.cmpi eq, %117, %119 : vector<16x31xi32>
    %121 = arith.extui %120 : vector<16x31xi1> to vector<16x31xi32>
    %122 = arith.sitofp %121 : vector<16x31xi32> to vector<16x31xf32>
    %123 = vector.shape_cast %115 : vector<2x6x16x16xf32> to vector<192x16xf32>
    %cst = arith.constant dense<0.000000e+00> : vector<192x31xf32>
    %124 = tpu.matmul %123, %122, %cst {dimension_numbers = #tpu.dot_dimension_numbers<[1], [0], [0], [1], [0, 0, 1, 1], [], []>} : vector<192x16xf32>, vector<16x31xf32>, vector<192x31xf32> -> vector<192x31xf32>
    %125 = vector.shape_cast %124 : vector<192x31xf32> to vector<2x6x16x31xf32>
    %c0_46 = arith.constant 0 : index
    %126 = memref.load %arg4[%c0_46] : memref<6xf32, #tpu.memory_space<smem>>
    %127 = vector.broadcast %126 : f32 to vector<1x1x1x1xf32>
    %c1_47 = arith.constant 1 : index
    %128 = memref.load %arg4[%c1_47] : memref<6xf32, #tpu.memory_space<smem>>
    %129 = vector.broadcast %128 : f32 to vector<1x1x1x1xf32>
    %c2_48 = arith.constant 2 : index
    %130 = memref.load %arg4[%c2_48] : memref<6xf32, #tpu.memory_space<smem>>
    %131 = vector.broadcast %130 : f32 to vector<1x1x1x1xf32>
    %c3_49 = arith.constant 3 : index
    %132 = memref.load %arg4[%c3_49] : memref<6xf32, #tpu.memory_space<smem>>
    %133 = vector.broadcast %132 : f32 to vector<1x1x1x1xf32>
    %c4_50 = arith.constant 4 : index
    %134 = memref.load %arg4[%c4_50] : memref<6xf32, #tpu.memory_space<smem>>
    %135 = vector.broadcast %134 : f32 to vector<1x1x1x1xf32>
    %c5_51 = arith.constant 5 : index
    %136 = memref.load %arg4[%c5_51] : memref<6xf32, #tpu.memory_space<smem>>
    %137 = vector.broadcast %136 : f32 to vector<1x1x1x1xf32>
    %138 = tpu.concatenate %127, %129, %131, %133, %135, %137 in 1 : vector<1x1x1x1xf32>, vector<1x1x1x1xf32>, vector<1x1x1x1xf32>, vector<1x1x1x1xf32>, vector<1x1x1x1xf32>, vector<1x1x1x1xf32> -> vector<1x6x1x1xf32>
    %139 = vector.shape_cast %138 : vector<1x6x1x1xf32> to vector<1x6x1x1xf32>
    %140 = vector.broadcast %139 : vector<1x6x1x1xf32> to vector<2x6x31x31xf32>
    %c0_52 = arith.constant 0 : index
    %c0_53 = arith.constant 0 : index
    %c0_54 = arith.constant 0 : index
    %c0_55 = arith.constant 0 : index
    %141 = vector.load %arg5[%c0_52, %c0_53, %c0_54, %c0_55] : memref<2x9x31x31xf32, #tpu.memory_space<vmem>>, vector<2x6x31x31xf32>
    tpu.vector_store %arg5[%c0_52, %c0_53, %c0_54, %c0_55], %140 {strides = array<i32>} : memref<2x9x31x31xf32, #tpu.memory_space<vmem>>, vector<2x6x31x31xf32>,
    %142 = vector.broadcast %138 : vector<1x6x1x1xf32> to vector<2x6x16x31xf32>
    %143 = arith.addf %125, %142 : vector<2x6x16x31xf32>
    %144 = vector.extract_strided_slice %143 {offsets = [0, 0, 0, 0], sizes = [2, 6, 1, 31], strides = [1, 1, 1, 1]} : vector<2x6x16x31xf32> to vector<2x6x1x31xf32>
    %c0_56 = arith.constant 0 : index
    %c0_57 = arith.constant 0 : index
    %c0_58 = arith.constant 0 : index
    %c0_59 = arith.constant 0 : index
    %145 = vector.load %arg5[%c0_56, %c0_57, %c0_58, %c0_59] : memref<2x9x31x31xf32, #tpu.memory_space<vmem>>, vector<2x6x1x31xf32>
    tpu.vector_store %arg5[%c0_56, %c0_57, %c0_58, %c0_59], %144 {strides = array<i32>} : memref<2x9x31x31xf32, #tpu.memory_space<vmem>>, vector<2x6x1x31xf32>,
    %146 = vector.extract_strided_slice %143 {offsets = [0, 0, 1, 0], sizes = [2, 6, 1, 31], strides = [1, 1, 1, 1]} : vector<2x6x16x31xf32> to vector<2x6x1x31xf32>
    %c0_60 = arith.constant 0 : index
    %c0_61 = arith.constant 0 : index
    %c2_62 = arith.constant 2 : index
    %c0_63 = arith.constant 0 : index
    %147 = vector.load %arg5[%c0_60, %c0_61, %c2_62, %c0_63] : memref<2x9x31x31xf32, #tpu.memory_space<vmem>>, vector<2x6x1x31xf32>
    tpu.vector_store %arg5[%c0_60, %c0_61, %c2_62, %c0_63], %146 {strides = array<i32>} : memref<2x9x31x31xf32, #tpu.memory_space<vmem>>, vector<2x6x1x31xf32>,
    %148 = vector.extract_strided_slice %143 {offsets = [0, 0, 2, 0], sizes = [2, 6, 1, 31], strides = [1, 1, 1, 1]} : vector<2x6x16x31xf32> to vector<2x6x1x31xf32>
    %c0_64 = arith.constant 0 : index
    %c0_65 = arith.constant 0 : index
    %c4_66 = arith.constant 4 : index
    %c0_67 = arith.constant 0 : index
    %149 = vector.load %arg5[%c0_64, %c0_65, %c4_66, %c0_67] : memref<2x9x31x31xf32, #tpu.memory_space<vmem>>, vector<2x6x1x31xf32>
    tpu.vector_store %arg5[%c0_64, %c0_65, %c4_66, %c0_67], %148 {strides = array<i32>} : memref<2x9x31x31xf32, #tpu.memory_space<vmem>>, vector<2x6x1x31xf32>,
    %150 = vector.extract_strided_slice %143 {offsets = [0, 0, 3, 0], sizes = [2, 6, 1, 31], strides = [1, 1, 1, 1]} : vector<2x6x16x31xf32> to vector<2x6x1x31xf32>
    %c0_68 = arith.constant 0 : index
    %c0_69 = arith.constant 0 : index
    %c6 = arith.constant 6 : index
    %c0_70 = arith.constant 0 : index
    %151 = vector.load %arg5[%c0_68, %c0_69, %c6, %c0_70] : memref<2x9x31x31xf32, #tpu.memory_space<vmem>>, vector<2x6x1x31xf32>
    tpu.vector_store %arg5[%c0_68, %c0_69, %c6, %c0_70], %150 {strides = array<i32>} : memref<2x9x31x31xf32, #tpu.memory_space<vmem>>, vector<2x6x1x31xf32>,
    %152 = vector.extract_strided_slice %143 {offsets = [0, 0, 4, 0], sizes = [2, 6, 1, 31], strides = [1, 1, 1, 1]} : vector<2x6x16x31xf32> to vector<2x6x1x31xf32>
    %c0_71 = arith.constant 0 : index
    %c0_72 = arith.constant 0 : index
    %c8 = arith.constant 8 : index
    %c0_73 = arith.constant 0 : index
    %153 = vector.load %arg5[%c0_71, %c0_72, %c8, %c0_73] : memref<2x9x31x31xf32, #tpu.memory_space<vmem>>, vector<2x6x1x31xf32>
    tpu.vector_store %arg5[%c0_71, %c0_72, %c8, %c0_73], %152 {strides = array<i32>} : memref<2x9x31x31xf32, #tpu.memory_space<vmem>>, vector<2x6x1x31xf32>,
    %154 = vector.extract_strided_slice %143 {offsets = [0, 0, 5, 0], sizes = [2, 6, 1, 31], strides = [1, 1, 1, 1]} : vector<2x6x16x31xf32> to vector<2x6x1x31xf32>
    %c0_74 = arith.constant 0 : index
    %c0_75 = arith.constant 0 : index
    %c10 = arith.constant 10 : index
    %c0_76 = arith.constant 0 : index
    %155 = vector.load %arg5[%c0_74, %c0_75, %c10, %c0_76] : memref<2x9x31x31xf32, #tpu.memory_space<vmem>>, vector<2x6x1x31xf32>
    tpu.vector_store %arg5[%c0_74, %c0_75, %c10, %c0_76], %154 {strides = array<i32>} : memref<2x9x31x31xf32, #tpu.memory_space<vmem>>, vector<2x6x1x31xf32>,
    %156 = vector.extract_strided_slice %143 {offsets = [0, 0, 6, 0], sizes = [2, 6, 1, 31], strides = [1, 1, 1, 1]} : vector<2x6x16x31xf32> to vector<2x6x1x31xf32>
    %c0_77 = arith.constant 0 : index
    %c0_78 = arith.constant 0 : index
    %c12 = arith.constant 12 : index
    %c0_79 = arith.constant 0 : index
    %157 = vector.load %arg5[%c0_77, %c0_78, %c12, %c0_79] : memref<2x9x31x31xf32, #tpu.memory_space<vmem>>, vector<2x6x1x31xf32>
    tpu.vector_store %arg5[%c0_77, %c0_78, %c12, %c0_79], %156 {strides = array<i32>} : memref<2x9x31x31xf32, #tpu.memory_space<vmem>>, vector<2x6x1x31xf32>,
    %158 = vector.extract_strided_slice %143 {offsets = [0, 0, 7, 0], sizes = [2, 6, 1, 31], strides = [1, 1, 1, 1]} : vector<2x6x16x31xf32> to vector<2x6x1x31xf32>
    %c0_80 = arith.constant 0 : index
    %c0_81 = arith.constant 0 : index
    %c14 = arith.constant 14 : index
    %c0_82 = arith.constant 0 : index
    %159 = vector.load %arg5[%c0_80, %c0_81, %c14, %c0_82] : memref<2x9x31x31xf32, #tpu.memory_space<vmem>>, vector<2x6x1x31xf32>
    tpu.vector_store %arg5[%c0_80, %c0_81, %c14, %c0_82], %158 {strides = array<i32>} : memref<2x9x31x31xf32, #tpu.memory_space<vmem>>, vector<2x6x1x31xf32>,
    %160 = vector.extract_strided_slice %143 {offsets = [0, 0, 8, 0], sizes = [2, 6, 1, 31], strides = [1, 1, 1, 1]} : vector<2x6x16x31xf32> to vector<2x6x1x31xf32>
    %c0_83 = arith.constant 0 : index
    %c0_84 = arith.constant 0 : index
    %c16 = arith.constant 16 : index
    %c0_85 = arith.constant 0 : index
    %161 = vector.load %arg5[%c0_83, %c0_84, %c16, %c0_85] : memref<2x9x31x31xf32, #tpu.memory_space<vmem>>, vector<2x6x1x31xf32>
    tpu.vector_store %arg5[%c0_83, %c0_84, %c16, %c0_85], %160 {strides = array<i32>} : memref<2x9x31x31xf32, #tpu.memory_space<vmem>>, vector<2x6x1x31xf32>,
    %162 = vector.extract_strided_slice %143 {offsets = [0, 0, 9, 0], sizes = [2, 6, 1, 31], strides = [1, 1, 1, 1]} : vector<2x6x16x31xf32> to vector<2x6x1x31xf32>
    %c0_86 = arith.constant 0 : index
    %c0_87 = arith.constant 0 : index
    %c18 = arith.constant 18 : index
    %c0_88 = arith.constant 0 : index
    %163 = vector.load %arg5[%c0_86, %c0_87, %c18, %c0_88] : memref<2x9x31x31xf32, #tpu.memory_space<vmem>>, vector<2x6x1x31xf32>
    tpu.vector_store %arg5[%c0_86, %c0_87, %c18, %c0_88], %162 {strides = array<i32>} : memref<2x9x31x31xf32, #tpu.memory_space<vmem>>, vector<2x6x1x31xf32>,
    %164 = vector.extract_strided_slice %143 {offsets = [0, 0, 10, 0], sizes = [2, 6, 1, 31], strides = [1, 1, 1, 1]} : vector<2x6x16x31xf32> to vector<2x6x1x31xf32>
    %c0_89 = arith.constant 0 : index
    %c0_90 = arith.constant 0 : index
    %c20 = arith.constant 20 : index
    %c0_91 = arith.constant 0 : index
    %165 = vector.load %arg5[%c0_89, %c0_90, %c20, %c0_91] : memref<2x9x31x31xf32, #tpu.memory_space<vmem>>, vector<2x6x1x31xf32>
    tpu.vector_store %arg5[%c0_89, %c0_90, %c20, %c0_91], %164 {strides = array<i32>} : memref<2x9x31x31xf32, #tpu.memory_space<vmem>>, vector<2x6x1x31xf32>,
    %166 = vector.extract_strided_slice %143 {offsets = [0, 0, 11, 0], sizes = [2, 6, 1, 31], strides = [1, 1, 1, 1]} : vector<2x6x16x31xf32> to vector<2x6x1x31xf32>
    %c0_92 = arith.constant 0 : index
    %c0_93 = arith.constant 0 : index
    %c22 = arith.constant 22 : index
    %c0_94 = arith.constant 0 : index
    %167 = vector.load %arg5[%c0_92, %c0_93, %c22, %c0_94] : memref<2x9x31x31xf32, #tpu.memory_space<vmem>>, vector<2x6x1x31xf32>
    tpu.vector_store %arg5[%c0_92, %c0_93, %c22, %c0_94], %166 {strides = array<i32>} : memref<2x9x31x31xf32, #tpu.memory_space<vmem>>, vector<2x6x1x31xf32>,
    %168 = vector.extract_strided_slice %143 {offsets = [0, 0, 12, 0], sizes = [2, 6, 1, 31], strides = [1, 1, 1, 1]} : vector<2x6x16x31xf32> to vector<2x6x1x31xf32>
    %c0_95 = arith.constant 0 : index
    %c0_96 = arith.constant 0 : index
    %c24 = arith.constant 24 : index
    %c0_97 = arith.constant 0 : index
    %169 = vector.load %arg5[%c0_95, %c0_96, %c24, %c0_97] : memref<2x9x31x31xf32, #tpu.memory_space<vmem>>, vector<2x6x1x31xf32>
    tpu.vector_store %arg5[%c0_95, %c0_96, %c24, %c0_97], %168 {strides = array<i32>} : memref<2x9x31x31xf32, #tpu.memory_space<vmem>>, vector<2x6x1x31xf32>,
    %170 = vector.extract_strided_slice %143 {offsets = [0, 0, 13, 0], sizes = [2, 6, 1, 31], strides = [1, 1, 1, 1]} : vector<2x6x16x31xf32> to vector<2x6x1x31xf32>
    %c0_98 = arith.constant 0 : index
    %c0_99 = arith.constant 0 : index
    %c26 = arith.constant 26 : index
    %c0_100 = arith.constant 0 : index
    %171 = vector.load %arg5[%c0_98, %c0_99, %c26, %c0_100] : memref<2x9x31x31xf32, #tpu.memory_space<vmem>>, vector<2x6x1x31xf32>
    tpu.vector_store %arg5[%c0_98, %c0_99, %c26, %c0_100], %170 {strides = array<i32>} : memref<2x9x31x31xf32, #tpu.memory_space<vmem>>, vector<2x6x1x31xf32>,
    %172 = vector.extract_strided_slice %143 {offsets = [0, 0, 14, 0], sizes = [2, 6, 1, 31], strides = [1, 1, 1, 1]} : vector<2x6x16x31xf32> to vector<2x6x1x31xf32>
    %c0_101 = arith.constant 0 : index
    %c0_102 = arith.constant 0 : index
    %c28 = arith.constant 28 : index
    %c0_103 = arith.constant 0 : index
    %173 = vector.load %arg5[%c0_101, %c0_102, %c28, %c0_103] : memref<2x9x31x31xf32, #tpu.memory_space<vmem>>, vector<2x6x1x31xf32>
    tpu.vector_store %arg5[%c0_101, %c0_102, %c28, %c0_103], %172 {strides = array<i32>} : memref<2x9x31x31xf32, #tpu.memory_space<vmem>>, vector<2x6x1x31xf32>,
    %174 = vector.extract_strided_slice %143 {offsets = [0, 0, 15, 0], sizes = [2, 6, 1, 31], strides = [1, 1, 1, 1]} : vector<2x6x16x31xf32> to vector<2x6x1x31xf32>
    %c0_104 = arith.constant 0 : index
    %c0_105 = arith.constant 0 : index
    %c30 = arith.constant 30 : index
    %c0_106 = arith.constant 0 : index
    %175 = vector.load %arg5[%c0_104, %c0_105, %c30, %c0_106] : memref<2x9x31x31xf32, #tpu.memory_space<vmem>>, vector<2x6x1x31xf32>
    tpu.vector_store %arg5[%c0_104, %c0_105, %c30, %c0_106], %174 {strides = array<i32>} : memref<2x9x31x31xf32, #tpu.memory_space<vmem>>, vector<2x6x1x31xf32>,
    %c0_107 = arith.constant 0 : index
    %c0_108 = arith.constant 0 : index
    %c0_109 = arith.constant 0 : index
    %c0_110 = arith.constant 0 : index
    %176 = vector.load %arg2[%c0_107, %c0_108, %c0_109, %c0_110] : memref<2x3x31x31xf32, #tpu.memory_space<vmem>>, vector<2x3x31x31xf32>
    %c0_111 = arith.constant 0 : index
    %c6_112 = arith.constant 6 : index
    %c0_113 = arith.constant 0 : index
    %c0_114 = arith.constant 0 : index
    %177 = vector.load %arg5[%c0_111, %c6_112, %c0_113, %c0_114] : memref<2x9x31x31xf32, #tpu.memory_space<vmem>>, vector<2x3x31x31xf32>
    tpu.vector_store %arg5[%c0_111, %c6_112, %c0_113, %c0_114], %176 {strides = array<i32>} : memref<2x9x31x31xf32, #tpu.memory_space<vmem>>, vector<2x3x31x31xf32>,
    return
  }
  func.func @transform_0(%arg0: i32) -> (i32, i32, i32, i32) {
    %c0_i32 = arith.constant 0 : i32
    %c0_i32_0 = arith.constant 0 : i32
    %c0_i32_1 = arith.constant 0 : i32
    %c0_i32_2 = arith.constant 0 : i32
    return %arg0, %c0_i32, %c0_i32_0, %c0_i32_1 : i32, i32, i32, i32
  }
  func.func @transform_1(%arg0: i32) -> (i32, i32, i32, i32) {
    %c0_i32 = arith.constant 0 : i32
    %c0_i32_0 = arith.constant 0 : i32
    %c0_i32_1 = arith.constant 0 : i32
    %c0_i32_2 = arith.constant 0 : i32
    return %arg0, %c0_i32, %c0_i32_0, %c0_i32_1 : i32, i32, i32, i32
  }
  func.func @transform_2(%arg0: i32) -> (i32, i32) {
    %c0_i32 = arith.constant 0 : i32
    %c0_i32_0 = arith.constant 0 : i32
    %c0_i32_1 = arith.constant 0 : i32
    return %c0_i32, %c0_i32_0 : i32, i32
  }
  func.func @transform_3(%arg0: i32) -> i32 {
    %c0_i32 = arith.constant 0 : i32
    %c0_i32_0 = arith.constant 0 : i32
    return %c0_i32 : i32
  }
  func.func @transform_4(%arg0: i32) -> (i32, i32, i32, i32) {
    %c0_i32 = arith.constant 0 : i32
    %c0_i32_0 = arith.constant 0 : i32
    %c0_i32_1 = arith.constant 0 : i32
    %c0_i32_2 = arith.constant 0 : i32
    return %arg0, %c0_i32, %c0_i32_0, %c0_i32_1 : i32, i32, i32, i32
  }
}

</mosaic_0001>

<llo_original>
// kernel: tpu_custom_call.1
$region0: #{tpu_custom_call.1}
  #allocation0 [shape = 'u32[]', space=smem, size = 0x4, offset = 0x4, fixed_abs, tag = 'smem constant byte address 0x4 - core index']
  #allocation1 [shape = 'u32[72,128]{1,0:T(1,128)}', space=vmem, size = 0x9000, scoped, tag = 'internal scratch']
  %s0 = inlined_call_operand.vmem [shape: f32[2,4,16,16], index: 0, kind: input, shape index: {}]
  %s1 = inlined_call_operand.vmem [shape: f32[2,3,31,31], index: 1, kind: input, shape index: {}]
  %s2 = inlined_call_operand.vmem [shape: f32[6,4], index: 2, kind: input, shape index: {}]
  %s3 = inlined_call_operand.vmem [shape: f32[6], index: 3, kind: input, shape index: {}]
  %s4 = inlined_call_operand.vmem [shape: f32[2,9,31,31], index: 4, kind: output, shape index: {}]
  %s5 = sld [smem:[#allocation0]]
  $region34: #{tpu_custom_call.1} parent=0
    _
  %s7 = ssub.s32 1, %s5
  %s8 = scalar_select 0, %s7, %s5
  $region1: #{tpu_custom_call.1} parent=0
    #allocation2 [shape = 'u8[4096]{0}', space=smem, size = 0x1000, scoped, tag = 'input window, operand 2, single buffered']
    #allocation3 [shape = 's32[1]{0}', space=sflag, size = 0x4, scoped, tag = 'scoped memory for tpu_custom_call.1']
    #allocation4 [shape = 'u8[512]{0}', space=smem, size = 0x200, scoped, tag = 'input window, operand 3, single buffered']
    #allocation5 [shape = 's32[1]{0}', space=sflag, size = 0x4, scoped, tag = 'scoped memory for tpu_custom_call.1']
    %9 = vsyncpa [#allocation3], 0
    %10 = vsyncpa [#allocation5], 0
    // Predicated region
    $region2: #{tpu_custom_call.1} parent=1 // pred_check
      _
    $region3: #{tpu_custom_call.1} parent=1 // pred_check_branch
      %12 = sbr.rel (0) target = $region5
    $region4: #{tpu_custom_call.1} parent=1 // pred_region
      _
    $region5: #{tpu_custom_call.1} parent=1 // pred_fallthru
      _
    // Predicated region
    $region6: #{tpu_custom_call.1} parent=1 // pred_check
      _
    $region7: #{tpu_custom_call.1} parent=1 // pred_check_branch
      %14 = sbr.rel (0) target = $region9
    $region8: #{tpu_custom_call.1} parent=1 // pred_region
      _
    $region9: #{tpu_custom_call.1} parent=1 // pred_fallthru
      _
    // Predicated region
    $region10: #{tpu_custom_call.1} parent=1 // pred_check
      _
    $region11: #{tpu_custom_call.1} parent=1 // pred_check_branch
      %16 = sbr.rel (0) target = $region13
    $region12: #{tpu_custom_call.1} parent=1 // pred_region
      %18 = vsyncadd [#allocation3], 0
      %s20 = sshll.u32 %s2, 4
      %s21 = int_to_ptr.vmem [resolvable:$true] %s20
      %23 = dma.vmem_to_smem %s21, 128, [#allocation2], [#allocation3]
    $region13: #{tpu_custom_call.1} parent=1 // pred_fallthru
      _
    // Predicated region
    $region14: #{tpu_custom_call.1} parent=1 // pred_check
      _
    $region15: #{tpu_custom_call.1} parent=1 // pred_check_branch
      %25 = sbr.rel (0) target = $region17
    $region16: #{tpu_custom_call.1} parent=1 // pred_region
      %27 = vsyncadd [#allocation5], 0
      %s29 = sshll.u32 %s3, 4
      %s30 = int_to_ptr.vmem [resolvable:$true] %s29
      %32 = dma.vmem_to_smem %s30, 16, [#allocation4], [#allocation5]
    $region17: #{tpu_custom_call.1} parent=1 // pred_fallthru
      _
    // Predicated region
    $region18: #{tpu_custom_call.1} parent=1 // pred_check
      _
    $region19: #{tpu_custom_call.1} parent=1 // pred_check_branch
      %34 = sbr.rel (0) target = $region21
    $region20: #{tpu_custom_call.1} parent=1 // pred_region
      %36 = dma.done [#allocation3], 128
    $region21: #{tpu_custom_call.1} parent=1 // pred_fallthru
      _
    // Predicated region
    $region22: #{tpu_custom_call.1} parent=1 // pred_check
      _
    $region23: #{tpu_custom_call.1} parent=1 // pred_check_branch
      %38 = sbr.rel (0) target = $region25
    $region24: #{tpu_custom_call.1} parent=1 // pred_region
      %40 = dma.done [#allocation5], 16
    $region25: #{tpu_custom_call.1} parent=1 // pred_fallthru
      _
    %41 = sfence
    %v42 = vld [vmem:[%s0] sm:$0xff]
    %v43 = vld [vmem:[%s0 + $0x8] sm:$0xff]
    %v44 = vld [vmem:[%s0 + $0x10] sm:$0xff]
    %v45 = vld [vmem:[%s0 + $0x18] sm:$0xff]
    %v46 = vld [vmem:[%s0 + $0x20] sm:$0xff]
    %v47 = vld [vmem:[%s0 + $0x28] sm:$0xff]
    %v48 = vld [vmem:[%s0 + $0x30] sm:$0xff]
    %v49 = vld [vmem:[%s0 + $0x38] sm:$0xff]
    %v50 = vld [vmem:[%s0 + $0x40] sm:$0xff]
    %v51 = vld [vmem:[%s0 + $0x48] sm:$0xff]
    %v52 = vld [vmem:[%s0 + $0x50] sm:$0xff]
    %v53 = vld [vmem:[%s0 + $0x58] sm:$0xff]
    %v54 = vld [vmem:[%s0 + $0x60] sm:$0xff]
    %v55 = vld [vmem:[%s0 + $0x68] sm:$0xff]
    %v56 = vld [vmem:[%s0 + $0x70] sm:$0xff]
    %v57 = vld [vmem:[%s0 + $0x78] sm:$0xff]
    %s58 = sld [smem:[#allocation2]]
    %v59 = vstv %s58
    %v60 = vmul.f32 %v42, %v59
    %v61 = vmul.f32 %v43, %v59
    %v62 = vmul.f32 %v50, %v59
    %v63 = vmul.f32 %v51, %v59
    %s64 = sld [smem:[#allocation2 + $0x1]]
    %v65 = vstv %s64
    %v66 = vmul.f32 %v44, %v65
    %v67 = vmul.f32 %v45, %v65
    %v68 = vmul.f32 %v52, %v65
    %v69 = vmul.f32 %v53, %v65
    %v70 = vadd.f32 %v60, %v66
    %v71 = vadd.f32 %v61, %v67
    %v72 = vadd.f32 %v62, %v68
    %v73 = vadd.f32 %v63, %v69
    %s74 = sld [smem:[#allocation2 + $0x2]]
    %v75 = vstv %s74
    %v76 = vmul.f32 %v46, %v75
    %v77 = vmul.f32 %v47, %v75
    %v78 = vmul.f32 %v54, %v75
    %v79 = vmul.f32 %v55, %v75
    %v80 = vadd.f32 %v70, %v76
    %v81 = vadd.f32 %v71, %v77
    %v82 = vadd.f32 %v72, %v78
    %v83 = vadd.f32 %v73, %v79
    %s84 = sld [smem:[#allocation2 + $0x3]]
    %v85 = vstv %s84
    %v86 = vmul.f32 %v48, %v85
    %v87 = vmul.f32 %v49, %v85
    %v88 = vmul.f32 %v56, %v85
    %v89 = vmul.f32 %v57, %v85
    %v90 = vadd.f32 %v80, %v86
    %v91 = vadd.f32 %v81, %v87
    %v92 = vadd.f32 %v82, %v88
    %v93 = vadd.f32 %v83, %v89
    %s94 = sld [smem:[#allocation2 + $0x80]]
    %v95 = vstv %s94
    %v96 = vmul.f32 %v42, %v95
    %v97 = vmul.f32 %v43, %v95
    %v98 = vmul.f32 %v50, %v95
    %v99 = vmul.f32 %v51, %v95
    %s100 = sld [smem:[#allocation2 + $0x81]]
    %v101 = vstv %s100
    %v102 = vmul.f32 %v44, %v101
    %v103 = vmul.f32 %v45, %v101
    %v104 = vmul.f32 %v52, %v101
    %v105 = vmul.f32 %v53, %v101
    %v106 = vadd.f32 %v96, %v102
    %v107 = vadd.f32 %v97, %v103
    %v108 = vadd.f32 %v98, %v104
    %v109 = vadd.f32 %v99, %v105
    %s110 = sld [smem:[#allocation2 + $0x82]]
    %v111 = vstv %s110
    %v112 = vmul.f32 %v46, %v111
    %v113 = vmul.f32 %v47, %v111
    %v114 = vmul.f32 %v54, %v111
    %v115 = vmul.f32 %v55, %v111
    %v116 = vadd.f32 %v106, %v112
    %v117 = vadd.f32 %v107, %v113
    %v118 = vadd.f32 %v108, %v114
    %v119 = vadd.f32 %v109, %v115
    %s120 = sld [smem:[#allocation2 + $0x83]]
    %v121 = vstv %s120
    %v122 = vmul.f32 %v48, %v121
    %v123 = vmul.f32 %v49, %v121
    %v124 = vmul.f32 %v56, %v121
    %v125 = vmul.f32 %v57, %v121
    %v126 = vadd.f32 %v116, %v122
    %v127 = vadd.f32 %v117, %v123
    %v128 = vadd.f32 %v118, %v124
    %v129 = vadd.f32 %v119, %v125
    %s130 = sld [smem:[#allocation2 + $0x100]]
    %v131 = vstv %s130
    %v132 = vmul.f32 %v42, %v131
    %v133 = vmul.f32 %v43, %v131
    %v134 = vmul.f32 %v50, %v131
    %v135 = vmul.f32 %v51, %v131
    %s136 = sld [smem:[#allocation2 + $0x101]]
    %v137 = vstv %s136
    %v138 = vmul.f32 %v44, %v137
    %v139 = vmul.f32 %v45, %v137
    %v140 = vmul.f32 %v52, %v137
    %v141 = vmul.f32 %v53, %v137
    %v142 = vadd.f32 %v132, %v138
    %v143 = vadd.f32 %v133, %v139
    %v144 = vadd.f32 %v134, %v140
    %v145 = vadd.f32 %v135, %v141
    %s146 = sld [smem:[#allocation2 + $0x102]]
    %v147 = vstv %s146
    %v148 = vmul.f32 %v46, %v147
    %v149 = vmul.f32 %v47, %v147
    %v150 = vmul.f32 %v54, %v147
    %v151 = vmul.f32 %v55, %v147
    %v152 = vadd.f32 %v142, %v148
    %v153 = vadd.f32 %v143, %v149
    %v154 = vadd.f32 %v144, %v150
    %v155 = vadd.f32 %v145, %v151
    %s156 = sld [smem:[#allocation2 + $0x103]]
    %v157 = vstv %s156
    %v158 = vmul.f32 %v48, %v157
    %v159 = vmul.f32 %v49, %v157
    %v160 = vmul.f32 %v56, %v157
    %v161 = vmul.f32 %v57, %v157
    %v162 = vadd.f32 %v152, %v158
    %v163 = vadd.f32 %v153, %v159
    %v164 = vadd.f32 %v154, %v160
    %v165 = vadd.f32 %v155, %v161
    %s166 = sld [smem:[#allocation2 + $0x180]]
    %v167 = vstv %s166
    %v168 = vmul.f32 %v42, %v167
    %v169 = vmul.f32 %v43, %v167
    %v170 = vmul.f32 %v50, %v167
    %v171 = vmul.f32 %v51, %v167
    %s172 = sld [smem:[#allocation2 + $0x181]]
    %v173 = vstv %s172
    %v174 = vmul.f32 %v44, %v173
    %v175 = vmul.f32 %v45, %v173
    %v176 = vmul.f32 %v52, %v173
    %v177 = vmul.f32 %v53, %v173
    %v178 = vadd.f32 %v168, %v174
    %v179 = vadd.f32 %v169, %v175
    %v180 = vadd.f32 %v170, %v176
    %v181 = vadd.f32 %v171, %v177
    %s182 = sld [smem:[#allocation2 + $0x182]]
    %v183 = vstv %s182
    %v184 = vmul.f32 %v46, %v183
    %v185 = vmul.f32 %v47, %v183
    %v186 = vmul.f32 %v54, %v183
    %v187 = vmul.f32 %v55, %v183
    %v188 = vadd.f32 %v178, %v184
    %v189 = vadd.f32 %v179, %v185
    %v190 = vadd.f32 %v180, %v186
    %v191 = vadd.f32 %v181, %v187
    %s192 = sld [smem:[#allocation2 + $0x183]]
    %v193 = vstv %s192
    %v194 = vmul.f32 %v48, %v193
    %v195 = vmul.f32 %v49, %v193
    %v196 = vmul.f32 %v56, %v193
    %v197 = vmul.f32 %v57, %v193
    %v198 = vadd.f32 %v188, %v194
    %v199 = vadd.f32 %v189, %v195
    %v200 = vadd.f32 %v190, %v196
    %v201 = vadd.f32 %v191, %v197
    %s202 = sld [smem:[#allocation2 + $0x200]]
    %v203 = vstv %s202
    %v204 = vmul.f32 %v42, %v203
    %v205 = vmul.f32 %v43, %v203
    %v206 = vmul.f32 %v50, %v203
    %v207 = vmul.f32 %v51, %v203
    %s208 = sld [smem:[#allocation2 + $0x201]]
    %v209 = vstv %s208
    %v210 = vmul.f32 %v44, %v209
    %v211 = vmul.f32 %v45, %v209
    %v212 = vmul.f32 %v52, %v209
    %v213 = vmul.f32 %v53, %v209
    %v214 = vadd.f32 %v204, %v210
    %v215 = vadd.f32 %v205, %v211
    %v216 = vadd.f32 %v206, %v212
    %v217 = vadd.f32 %v207, %v213
    %s218 = sld [smem:[#allocation2 + $0x202]]
    %v219 = vstv %s218
    %v220 = vmul.f32 %v46, %v219
    %v221 = vmul.f32 %v47, %v219
    %v222 = vmul.f32 %v54, %v219
    %v223 = vmul.f32 %v55, %v219
    %v224 = vadd.f32 %v214, %v220
    %v225 = vadd.f32 %v215, %v221
    %v226 = vadd.f32 %v216, %v222
    %v227 = vadd.f32 %v217, %v223
    %s228 = sld [smem:[#allocation2 + $0x203]]
    %v229 = vstv %s228
    %v230 = vmul.f32 %v48, %v229
    %v231 = vmul.f32 %v49, %v229
    %v232 = vmul.f32 %v56, %v229
    %v233 = vmul.f32 %v57, %v229
    %v234 = vadd.f32 %v224, %v230
    %v235 = vadd.f32 %v225, %v231
    %v236 = vadd.f32 %v226, %v232
    %v237 = vadd.f32 %v227, %v233
    %s238 = sld [smem:[#allocation2 + $0x280]]
    %v239 = vstv %s238
    %v240 = vmul.f32 %v42, %v239
    %v241 = vmul.f32 %v43, %v239
    %v242 = vmul.f32 %v50, %v239
    %v243 = vmul.f32 %v51, %v239
    %s244 = sld [smem:[#allocation2 + $0x281]]
    %v245 = vstv %s244
    %v246 = vmul.f32 %v44, %v245
    %v247 = vmul.f32 %v45, %v245
    %v248 = vmul.f32 %v52, %v245
    %v249 = vmul.f32 %v53, %v245
    %v250 = vadd.f32 %v240, %v246
    %v251 = vadd.f32 %v241, %v247
    %v252 = vadd.f32 %v242, %v248
    %v253 = vadd.f32 %v243, %v249
    %s254 = sld [smem:[#allocation2 + $0x282]]
    %v255 = vstv %s254
    %v256 = vmul.f32 %v46, %v255
    %v257 = vmul.f32 %v47, %v255
    %v258 = vmul.f32 %v54, %v255
    %v259 = vmul.f32 %v55, %v255
    %v260 = vadd.f32 %v250, %v256
    %v261 = vadd.f32 %v251, %v257
    %v262 = vadd.f32 %v252, %v258
    %v263 = vadd.f32 %v253, %v259
    %s264 = sld [smem:[#allocation2 + $0x283]]
    %v265 = vstv %s264
    %v266 = vmul.f32 %v48, %v265
    %v267 = vmul.f32 %v49, %v265
    %v268 = vmul.f32 %v56, %v265
    %v269 = vmul.f32 %v57, %v265
    %v270 = vadd.f32 %v260, %v266
    %v271 = vadd.f32 %v261, %v267
    %v272 = vadd.f32 %v262, %v268
    %v273 = vadd.f32 %v263, %v269
    %v274 = vlaneseq
    %v275 = vshrl.u32 %v274, 7
    %v276 = vadd.s32 %v275, 8
    %v277 = vlaneseq
    %v278 = vand.u32 %v277, 127
    %v279 = vmul.u32 %v275, 2
    %v280 = vmul.u32 %v276, 2
    %vm281 = vcmp.eq.s32.totalorder %v278, %v279
    %vm282 = vcmp.eq.s32.totalorder %v278, %v280
    %v283 = vsel %vm281, 1, 0
    %v284 = vsel %vm282, 1, 0
    %v285 = vcvt.s32.f32 %v283
    %v286 = vcvt.s32.f32 %v284
    %vm287 = vcmask 130048
    %v289 = vsel %vm287, %v90, 0
    %v292 = vsel %vm287, %v91, 0
    %v295 = vsel %vm287, %v126, 0
    %v298 = vsel %vm287, %v127, 0
    %v301 = vsel %vm287, %v162, 0
    %v304 = vsel %vm287, %v163, 0
    %v307 = vsel %vm287, %v198, 0
    %v310 = vsel %vm287, %v199, 0
    %v313 = vsel %vm287, %v234, 0
    %v316 = vsel %vm287, %v235, 0
    %v319 = vsel %vm287, %v270, 0
    %v322 = vsel %vm287, %v271, 0
    %v325 = vsel %vm287, %v92, 0
    %v328 = vsel %vm287, %v93, 0
    %v331 = vsel %vm287, %v128, 0
    %v334 = vsel %vm287, %v129, 0
    %v337 = vsel %vm287, %v164, 0
    %v340 = vsel %vm287, %v165, 0
    %v343 = vsel %vm287, %v200, 0
    %v346 = vsel %vm287, %v201, 0
    %v349 = vsel %vm287, %v236, 0
    %v352 = vsel %vm287, %v237, 0
    %v355 = vsel %vm287, %v272, 0
    %v358 = vsel %vm287, %v273, 0
    %360 = vmatpush.msra.mxu0 0.0
    %361 = vmatpush.msra.mxu0 0.0
    %362 = vmatpush.msra.mxu0 0.0
    %363 = vmatpush.msra.mxu0 0.0
    %364 = vmatpush.msra.mxu0 0.0
    %365 = vmatpush.msra.mxu0 0.0
    %366 = vmatpush.msra.mxu0 0.0
    %367 = vmatpush.msra.mxu0 0.0
    %368 = vmatpush.msra.mxu0 0.0
    %369 = vmatpush.msra.mxu0 0.0
    %370 = vmatpush.msra.mxu0 0.0
    %371 = vmatpush.msra.mxu0 0.0
    %372 = vmatpush.msra.mxu0 0.0
    %373 = vmatpush.msra.mxu0 0.0
    %374 = vmatpush.msra.mxu0 %v286
    %375 = vmatpush.msra.mxu0 %v285
    %376 = vmatmul.f32.gmra.mxu0 %v289
    %v377 = vpop.f32.mrf.mxu0
    %v378 = vadd.f32 0.0, %v377
    %379 = vmatmul.f32.gmra.mxu0 %v292
    %v380 = vpop.f32.mrf.mxu0
    %v381 = vadd.f32 0.0, %v380
    %382 = vmatmul.f32.gmra.mxu0 %v295
    %v383 = vpop.f32.mrf.mxu0
    %v384 = vadd.f32 0.0, %v383
    %385 = vmatmul.f32.gmra.mxu0 %v298
    %v386 = vpop.f32.mrf.mxu0
    %v387 = vadd.f32 0.0, %v386
    %388 = vmatmul.f32.gmra.mxu0 %v301
    %v389 = vpop.f32.mrf.mxu0
    %v390 = vadd.f32 0.0, %v389
    %391 = vmatmul.f32.gmra.mxu0 %v304
    %v392 = vpop.f32.mrf.mxu0
    %v393 = vadd.f32 0.0, %v392
    %394 = vmatmul.f32.gmra.mxu0 %v307
    %v395 = vpop.f32.mrf.mxu0
    %v396 = vadd.f32 0.0, %v395
    %397 = vmatmul.f32.gmra.mxu0 %v310
    %v398 = vpop.f32.mrf.mxu0
    %v399 = vadd.f32 0.0, %v398
    %400 = vmatmul.f32.gmra.mxu0 %v313
    %v401 = vpop.f32.mrf.mxu0
    %v402 = vadd.f32 0.0, %v401
    %403 = vmatmul.f32.gmra.mxu0 %v316
    %v404 = vpop.f32.mrf.mxu0
    %v405 = vadd.f32 0.0, %v404
    %406 = vmatmul.f32.gmra.mxu0 %v319
    %v407 = vpop.f32.mrf.mxu0
    %v408 = vadd.f32 0.0, %v407
    %409 = vmatmul.f32.gmra.mxu0 %v322
    %v410 = vpop.f32.mrf.mxu0
    %v411 = vadd.f32 0.0, %v410
    %412 = vmatmul.f32.gmra.mxu0 %v325
    %v413 = vpop.f32.mrf.mxu0
    %v414 = vadd.f32 0.0, %v413
    %415 = vmatmul.f32.gmra.mxu0 %v328
    %v416 = vpop.f32.mrf.mxu0
    %v417 = vadd.f32 0.0, %v416
    %418 = vmatmul.f32.gmra.mxu0 %v331
    %v419 = vpop.f32.mrf.mxu0
    %v420 = vadd.f32 0.0, %v419
    %421 = vmatmul.f32.gmra.mxu0 %v334
    %v422 = vpop.f32.mrf.mxu0
    %v423 = vadd.f32 0.0, %v422
    %424 = vmatmul.f32.gmra.mxu0 %v337
    %v425 = vpop.f32.mrf.mxu0
    %v426 = vadd.f32 0.0, %v425
    %427 = vmatmul.f32.gmra.mxu0 %v340
    %v428 = vpop.f32.mrf.mxu0
    %v429 = vadd.f32 0.0, %v428
    %430 = vmatmul.f32.gmra.mxu0 %v343
    %v431 = vpop.f32.mrf.mxu0
    %v432 = vadd.f32 0.0, %v431
    %433 = vmatmul.f32.gmra.mxu0 %v346
    %v434 = vpop.f32.mrf.mxu0
    %v435 = vadd.f32 0.0, %v434
    %436 = vmatmul.f32.gmra.mxu0 %v349
    %v437 = vpop.f32.mrf.mxu0
    %v438 = vadd.f32 0.0, %v437
    %439 = vmatmul.f32.gmra.mxu0 %v352
    %v440 = vpop.f32.mrf.mxu0
    %v441 = vadd.f32 0.0, %v440
    %442 = vmatmul.f32.gmra.mxu0 %v355
    %v443 = vpop.f32.mrf.mxu0
    %v444 = vadd.f32 0.0, %v443
    %445 = vmatmul.f32.gmra.mxu0 %v358
    %v446 = vpop.f32.mrf.mxu0
    %v447 = vadd.f32 0.0, %v446
    %448 = vdwg.mxu0
    %s449 = sld [smem:[#allocation4]]
    %v450 = vstv %s449
    %s451 = sld [smem:[#allocation4 + $0x1]]
    %v452 = vstv %s451
    %s453 = sld [smem:[#allocation4 + $0x2]]
    %v454 = vstv %s453
    %s455 = sld [smem:[#allocation4 + $0x3]]
    %v456 = vstv %s455
    %s457 = sld [smem:[#allocation4 + $0x4]]
    %v458 = vstv %s457
    %s459 = sld [smem:[#allocation4 + $0x5]]
    %v460 = vstv %s459
    %s462 = vtos %v450
    %v463 = vstv %s462
    %s466 = vtos %v452
    %v467 = vstv %s466
    %s470 = vtos %v454
    %v471 = vstv %s470
    %s474 = vtos %v456
    %v475 = vstv %s474
    %s478 = vtos %v458
    %v479 = vstv %s478
    %s482 = vtos %v460
    %v483 = vstv %s482
    %vm485 = vcmask 252928
    %486 = vst.msk [vmem:[%s4] sm:$0xff] %vm485, %v463
    %487 = vst.msk [vmem:[%s4 + $0x8] sm:$0xff] %vm485, %v463
    %488 = vst.msk [vmem:[%s4 + $0x10] sm:$0xff] %vm485, %v463
    %vm489 = vcmask 251904
    %490 = vst.msk [vmem:[%s4 + $0x18] sm:$0x7f] %vm489, %v463
    %491 = vst.msk [vmem:[%s4 + $0x20] sm:$0xff] %vm485, %v467
    %492 = vst.msk [vmem:[%s4 + $0x28] sm:$0xff] %vm485, %v467
    %493 = vst.msk [vmem:[%s4 + $0x30] sm:$0xff] %vm485, %v467
    %494 = vst.msk [vmem:[%s4 + $0x38] sm:$0x7f] %vm489, %v467
    %495 = vst.msk [vmem:[%s4 + $0x40] sm:$0xff] %vm485, %v471
    %496 = vst.msk [vmem:[%s4 + $0x48] sm:$0xff] %vm485, %v471
    %497 = vst.msk [vmem:[%s4 + $0x50] sm:$0xff] %vm485, %v471
    %498 = vst.msk [vmem:[%s4 + $0x58] sm:$0x7f] %vm489, %v471
    %499 = vst.msk [vmem:[%s4 + $0x60] sm:$0xff] %vm485, %v475
    %500 = vst.msk [vmem:[%s4 + $0x68] sm:$0xff] %vm485, %v475
    %501 = vst.msk [vmem:[%s4 + $0x70] sm:$0xff] %vm485, %v475
    %502 = vst.msk [vmem:[%s4 + $0x78] sm:$0x7f] %vm489, %v475
    %503 = vst.msk [vmem:[%s4 + $0x80] sm:$0xff] %vm485, %v479
    %504 = vst.msk [vmem:[%s4 + $0x88] sm:$0xff] %vm485, %v479
    %505 = vst.msk [vmem:[%s4 + $0x90] sm:$0xff] %vm485, %v479
    %506 = vst.msk [vmem:[%s4 + $0x98] sm:$0x7f] %vm489, %v479
    %507 = vst.msk [vmem:[%s4 + $0xa0] sm:$0xff] %vm485, %v483
    %508 = vst.msk [vmem:[%s4 + $0xa8] sm:$0xff] %vm485, %v483
    %509 = vst.msk [vmem:[%s4 + $0xb0] sm:$0xff] %vm485, %v483
    %510 = vst.msk [vmem:[%s4 + $0xb8] sm:$0x7f] %vm489, %v483
    %511 = vst.msk [vmem:[%s4 + $0x120] sm:$0xff] %vm485, %v463
    %512 = vst.msk [vmem:[%s4 + $0x128] sm:$0xff] %vm485, %v463
    %513 = vst.msk [vmem:[%s4 + $0x130] sm:$0xff] %vm485, %v463
    %514 = vst.msk [vmem:[%s4 + $0x138] sm:$0x7f] %vm489, %v463
    %515 = vst.msk [vmem:[%s4 + $0x140] sm:$0xff] %vm485, %v467
    %516 = vst.msk [vmem:[%s4 + $0x148] sm:$0xff] %vm485, %v467
    %517 = vst.msk [vmem:[%s4 + $0x150] sm:$0xff] %vm485, %v467
    %518 = vst.msk [vmem:[%s4 + $0x158] sm:$0x7f] %vm489, %v467
    %519 = vst.msk [vmem:[%s4 + $0x160] sm:$0xff] %vm485, %v471
    %520 = vst.msk [vmem:[%s4 + $0x168] sm:$0xff] %vm485, %v471
    %521 = vst.msk [vmem:[%s4 + $0x170] sm:$0xff] %vm485, %v471
    %522 = vst.msk [vmem:[%s4 + $0x178] sm:$0x7f] %vm489, %v471
    %523 = vst.msk [vmem:[%s4 + $0x180] sm:$0xff] %vm485, %v475
    %524 = vst.msk [vmem:[%s4 + $0x188] sm:$0xff] %vm485, %v475
    %525 = vst.msk [vmem:[%s4 + $0x190] sm:$0xff] %vm485, %v475
    %526 = vst.msk [vmem:[%s4 + $0x198] sm:$0x7f] %vm489, %v475
    %527 = vst.msk [vmem:[%s4 + $0x1a0] sm:$0xff] %vm485, %v479
    %528 = vst.msk [vmem:[%s4 + $0x1a8] sm:$0xff] %vm485, %v479
    %529 = vst.msk [vmem:[%s4 + $0x1b0] sm:$0xff] %vm485, %v479
    %530 = vst.msk [vmem:[%s4 + $0x1b8] sm:$0x7f] %vm489, %v479
    %531 = vst.msk [vmem:[%s4 + $0x1c0] sm:$0xff] %vm485, %v483
    %532 = vst.msk [vmem:[%s4 + $0x1c8] sm:$0xff] %vm485, %v483
    %533 = vst.msk [vmem:[%s4 + $0x1d0] sm:$0xff] %vm485, %v483
    %534 = vst.msk [vmem:[%s4 + $0x1d8] sm:$0x7f] %vm489, %v483
    %v535 = vadd.f32 %v378, %v463
    %v536 = vadd.f32 %v381, %v463
    %v537 = vadd.f32 %v384, %v467
    %v538 = vadd.f32 %v387, %v467
    %v539 = vadd.f32 %v390, %v471
    %v540 = vadd.f32 %v393, %v471
    %v541 = vadd.f32 %v396, %v475
    %v542 = vadd.f32 %v399, %v475
    %v543 = vadd.f32 %v402, %v479
    %v544 = vadd.f32 %v405, %v479
    %v545 = vadd.f32 %v408, %v483
    %v546 = vadd.f32 %v411, %v483
    %v547 = vadd.f32 %v414, %v463
    %v548 = vadd.f32 %v417, %v463
    %v549 = vadd.f32 %v420, %v467
    %v550 = vadd.f32 %v423, %v467
    %v551 = vadd.f32 %v426, %v471
    %v552 = vadd.f32 %v429, %v471
    %v553 = vadd.f32 %v432, %v475
    %v554 = vadd.f32 %v435, %v475
    %v555 = vadd.f32 %v438, %v479
    %v556 = vadd.f32 %v441, %v479
    %v557 = vadd.f32 %v444, %v483
    %v558 = vadd.f32 %v447, %v483
    %vm559 = vcmask 245760
    %560 = vst.msk [vmem:[%s4] sm:$0x1] %vm559, %v535
    %561 = vst.msk [vmem:[%s4 + $0x20] sm:$0x1] %vm559, %v537
    %562 = vst.msk [vmem:[%s4 + $0x40] sm:$0x1] %vm559, %v539
    %563 = vst.msk [vmem:[%s4 + $0x60] sm:$0x1] %vm559, %v541
    %564 = vst.msk [vmem:[%s4 + $0x80] sm:$0x1] %vm559, %v543
    %565 = vst.msk [vmem:[%s4 + $0xa0] sm:$0x1] %vm559, %v545
    %566 = vst.msk [vmem:[%s4 + $0x120] sm:$0x1] %vm559, %v547
    %567 = vst.msk [vmem:[%s4 + $0x140] sm:$0x1] %vm559, %v549
    %568 = vst.msk [vmem:[%s4 + $0x160] sm:$0x1] %vm559, %v551
    %569 = vst.msk [vmem:[%s4 + $0x180] sm:$0x1] %vm559, %v553
    %570 = vst.msk [vmem:[%s4 + $0x1a0] sm:$0x1] %vm559, %v555
    %571 = vst.msk [vmem:[%s4 + $0x1c0] sm:$0x1] %vm559, %v557
    %vm572 = vcmask 246785
    %573 = vst.msk [vmem:[%s4 + $0x1] sm:$0x2] %vm572, %v535
    %574 = vst.msk [vmem:[%s4 + $0x21] sm:$0x2] %vm572, %v537
    %575 = vst.msk [vmem:[%s4 + $0x41] sm:$0x2] %vm572, %v539
    %576 = vst.msk [vmem:[%s4 + $0x61] sm:$0x2] %vm572, %v541
    %577 = vst.msk [vmem:[%s4 + $0x81] sm:$0x2] %vm572, %v543
    %578 = vst.msk [vmem:[%s4 + $0xa1] sm:$0x2] %vm572, %v545
    %579 = vst.msk [vmem:[%s4 + $0x121] sm:$0x2] %vm572, %v547
    %580 = vst.msk [vmem:[%s4 + $0x141] sm:$0x2] %vm572, %v549
    %581 = vst.msk [vmem:[%s4 + $0x161] sm:$0x2] %vm572, %v551
    %582 = vst.msk [vmem:[%s4 + $0x181] sm:$0x2] %vm572, %v553
    %583 = vst.msk [vmem:[%s4 + $0x1a1] sm:$0x2] %vm572, %v555
    %584 = vst.msk [vmem:[%s4 + $0x1c1] sm:$0x2] %vm572, %v557
    %vm585 = vcmask 247810
    %586 = vst.msk [vmem:[%s4 + $0x2] sm:$0x4] %vm585, %v535
    %587 = vst.msk [vmem:[%s4 + $0x22] sm:$0x4] %vm585, %v537
    %588 = vst.msk [vmem:[%s4 + $0x42] sm:$0x4] %vm585, %v539
    %589 = vst.msk [vmem:[%s4 + $0x62] sm:$0x4] %vm585, %v541
    %590 = vst.msk [vmem:[%s4 + $0x82] sm:$0x4] %vm585, %v543
    %591 = vst.msk [vmem:[%s4 + $0xa2] sm:$0x4] %vm585, %v545
    %592 = vst.msk [vmem:[%s4 + $0x122] sm:$0x4] %vm585, %v547
    %593 = vst.msk [vmem:[%s4 + $0x142] sm:$0x4] %vm585, %v549
    %594 = vst.msk [vmem:[%s4 + $0x162] sm:$0x4] %vm585, %v551
    %595 = vst.msk [vmem:[%s4 + $0x182] sm:$0x4] %vm585, %v553
    %596 = vst.msk [vmem:[%s4 + $0x1a2] sm:$0x4] %vm585, %v555
    %597 = vst.msk [vmem:[%s4 + $0x1c2] sm:$0x4] %vm585, %v557
    %vm598 = vcmask 248835
    %599 = vst.msk [vmem:[%s4 + $0x3] sm:$0x8] %vm598, %v535
    %600 = vst.msk [vmem:[%s4 + $0x23] sm:$0x8] %vm598, %v537
    %601 = vst.msk [vmem:[%s4 + $0x43] sm:$0x8] %vm598, %v539
    %602 = vst.msk [vmem:[%s4 + $0x63] sm:$0x8] %vm598, %v541
    %603 = vst.msk [vmem:[%s4 + $0x83] sm:$0x8] %vm598, %v543
    %604 = vst.msk [vmem:[%s4 + $0xa3] sm:$0x8] %vm598, %v545
    %605 = vst.msk [vmem:[%s4 + $0x123] sm:$0x8] %vm598, %v547
    %606 = vst.msk [vmem:[%s4 + $0x143] sm:$0x8] %vm598, %v549
    %607 = vst.msk [vmem:[%s4 + $0x163] sm:$0x8] %vm598, %v551
    %608 = vst.msk [vmem:[%s4 + $0x183] sm:$0x8] %vm598, %v553
    %609 = vst.msk [vmem:[%s4 + $0x1a3] sm:$0x8] %vm598, %v555
    %610 = vst.msk [vmem:[%s4 + $0x1c3] sm:$0x8] %vm598, %v557
    %vm611 = vcmask 249860
    %612 = vst.msk [vmem:[%s4 + $0x4] sm:$0x10] %vm611, %v535
    %613 = vst.msk [vmem:[%s4 + $0x24] sm:$0x10] %vm611, %v537
    %614 = vst.msk [vmem:[%s4 + $0x44] sm:$0x10] %vm611, %v539
    %615 = vst.msk [vmem:[%s4 + $0x64] sm:$0x10] %vm611, %v541
    %616 = vst.msk [vmem:[%s4 + $0x84] sm:$0x10] %vm611, %v543
    %617 = vst.msk [vmem:[%s4 + $0xa4] sm:$0x10] %vm611, %v545
    %618 = vst.msk [vmem:[%s4 + $0x124] sm:$0x10] %vm611, %v547
    %619 = vst.msk [vmem:[%s4 + $0x144] sm:$0x10] %vm611, %v549
    %620 = vst.msk [vmem:[%s4 + $0x164] sm:$0x10] %vm611, %v551
    %621 = vst.msk [vmem:[%s4 + $0x184] sm:$0x10] %vm611, %v553
    %622 = vst.msk [vmem:[%s4 + $0x1a4] sm:$0x10] %vm611, %v555
    %623 = vst.msk [vmem:[%s4 + $0x1c4] sm:$0x10] %vm611, %v557
    %vm624 = vcmask 250885
    %625 = vst.msk [vmem:[%s4 + $0x5] sm:$0x20] %vm624, %v535
    %626 = vst.msk [vmem:[%s4 + $0x25] sm:$0x20] %vm624, %v537
    %627 = vst.msk [vmem:[%s4 + $0x45] sm:$0x20] %vm624, %v539
    %628 = vst.msk [vmem:[%s4 + $0x65] sm:$0x20] %vm624, %v541
    %629 = vst.msk [vmem:[%s4 + $0x85] sm:$0x20] %vm624, %v543
    %630 = vst.msk [vmem:[%s4 + $0xa5] sm:$0x20] %vm624, %v545
    %631 = vst.msk [vmem:[%s4 + $0x125] sm:$0x20] %vm624, %v547
    %632 = vst.msk [vmem:[%s4 + $0x145] sm:$0x20] %vm624, %v549
    %633 = vst.msk [vmem:[%s4 + $0x165] sm:$0x20] %vm624, %v551
    %634 = vst.msk [vmem:[%s4 + $0x185] sm:$0x20] %vm624, %v553
    %635 = vst.msk [vmem:[%s4 + $0x1a5] sm:$0x20] %vm624, %v555
    %636 = vst.msk [vmem:[%s4 + $0x1c5] sm:$0x20] %vm624, %v557
    %vm637 = vcmask 251910
    %638 = vst.msk [vmem:[%s4 + $0x6] sm:$0x40] %vm637, %v535
    %639 = vst.msk [vmem:[%s4 + $0x26] sm:$0x40] %vm637, %v537
    %640 = vst.msk [vmem:[%s4 + $0x46] sm:$0x40] %vm637, %v539
    %641 = vst.msk [vmem:[%s4 + $0x66] sm:$0x40] %vm637, %v541
    %642 = vst.msk [vmem:[%s4 + $0x86] sm:$0x40] %vm637, %v543
    %643 = vst.msk [vmem:[%s4 + $0xa6] sm:$0x40] %vm637, %v545
    %644 = vst.msk [vmem:[%s4 + $0x126] sm:$0x40] %vm637, %v547
    %645 = vst.msk [vmem:[%s4 + $0x146] sm:$0x40] %vm637, %v549
    %646 = vst.msk [vmem:[%s4 + $0x166] sm:$0x40] %vm637, %v551
    %647 = vst.msk [vmem:[%s4 + $0x186] sm:$0x40] %vm637, %v553
    %648 = vst.msk [vmem:[%s4 + $0x1a6] sm:$0x40] %vm637, %v555
    %649 = vst.msk [vmem:[%s4 + $0x1c6] sm:$0x40] %vm637, %v557
    %vm650 = vcmask 252935
    %651 = vst.msk [vmem:[%s4 + $0x7] sm:$0x80] %vm650, %v535
    %652 = vst.msk [vmem:[%s4 + $0x27] sm:$0x80] %vm650, %v537
    %653 = vst.msk [vmem:[%s4 + $0x47] sm:$0x80] %vm650, %v539
    %654 = vst.msk [vmem:[%s4 + $0x67] sm:$0x80] %vm650, %v541
    %655 = vst.msk [vmem:[%s4 + $0x87] sm:$0x80] %vm650, %v543
    %656 = vst.msk [vmem:[%s4 + $0xa7] sm:$0x80] %vm650, %v545
    %657 = vst.msk [vmem:[%s4 + $0x127] sm:$0x80] %vm650, %v547
    %658 = vst.msk [vmem:[%s4 + $0x147] sm:$0x80] %vm650, %v549
    %659 = vst.msk [vmem:[%s4 + $0x167] sm:$0x80] %vm650, %v551
    %660 = vst.msk [vmem:[%s4 + $0x187] sm:$0x80] %vm650, %v553
    %661 = vst.msk [vmem:[%s4 + $0x1a7] sm:$0x80] %vm650, %v555
    %662 = vst.msk [vmem:[%s4 + $0x1c7] sm:$0x80] %vm650, %v557
    %663 = vst.msk [vmem:[%s4 + $0x10] sm:$0x1] %vm559, %v536
    %664 = vst.msk [vmem:[%s4 + $0x30] sm:$0x1] %vm559, %v538
    %665 = vst.msk [vmem:[%s4 + $0x50] sm:$0x1] %vm559, %v540
    %666 = vst.msk [vmem:[%s4 + $0x70] sm:$0x1] %vm559, %v542
    %667 = vst.msk [vmem:[%s4 + $0x90] sm:$0x1] %vm559, %v544
    %668 = vst.msk [vmem:[%s4 + $0xb0] sm:$0x1] %vm559, %v546
    %669 = vst.msk [vmem:[%s4 + $0x130] sm:$0x1] %vm559, %v548
    %670 = vst.msk [vmem:[%s4 + $0x150] sm:$0x1] %vm559, %v550
    %671 = vst.msk [vmem:[%s4 + $0x170] sm:$0x1] %vm559, %v552
    %672 = vst.msk [vmem:[%s4 + $0x190] sm:$0x1] %vm559, %v554
    %673 = vst.msk [vmem:[%s4 + $0x1b0] sm:$0x1] %vm559, %v556
    %674 = vst.msk [vmem:[%s4 + $0x1d0] sm:$0x1] %vm559, %v558
    %675 = vst.msk [vmem:[%s4 + $0x11] sm:$0x2] %vm572, %v536
    %676 = vst.msk [vmem:[%s4 + $0x31] sm:$0x2] %vm572, %v538
    %677 = vst.msk [vmem:[%s4 + $0x51] sm:$0x2] %vm572, %v540
    %678 = vst.msk [vmem:[%s4 + $0x71] sm:$0x2] %vm572, %v542
    %679 = vst.msk [vmem:[%s4 + $0x91] sm:$0x2] %vm572, %v544
    %680 = vst.msk [vmem:[%s4 + $0xb1] sm:$0x2] %vm572, %v546
    %681 = vst.msk [vmem:[%s4 + $0x131] sm:$0x2] %vm572, %v548
    %682 = vst.msk [vmem:[%s4 + $0x151] sm:$0x2] %vm572, %v550
    %683 = vst.msk [vmem:[%s4 + $0x171] sm:$0x2] %vm572, %v552
    %684 = vst.msk [vmem:[%s4 + $0x191] sm:$0x2] %vm572, %v554
    %685 = vst.msk [vmem:[%s4 + $0x1b1] sm:$0x2] %vm572, %v556
    %686 = vst.msk [vmem:[%s4 + $0x1d1] sm:$0x2] %vm572, %v558
    %687 = vst.msk [vmem:[%s4 + $0x12] sm:$0x4] %vm585, %v536
    %688 = vst.msk [vmem:[%s4 + $0x32] sm:$0x4] %vm585, %v538
    %689 = vst.msk [vmem:[%s4 + $0x52] sm:$0x4] %vm585, %v540
    %690 = vst.msk [vmem:[%s4 + $0x72] sm:$0x4] %vm585, %v542
    %691 = vst.msk [vmem:[%s4 + $0x92] sm:$0x4] %vm585, %v544
    %692 = vst.msk [vmem:[%s4 + $0xb2] sm:$0x4] %vm585, %v546
    %693 = vst.msk [vmem:[%s4 + $0x132] sm:$0x4] %vm585, %v548
    %694 = vst.msk [vmem:[%s4 + $0x152] sm:$0x4] %vm585, %v550
    %695 = vst.msk [vmem:[%s4 + $0x172] sm:$0x4] %vm585, %v552
    %696 = vst.msk [vmem:[%s4 + $0x192] sm:$0x4] %vm585, %v554
    %697 = vst.msk [vmem:[%s4 + $0x1b2] sm:$0x4] %vm585, %v556
    %698 = vst.msk [vmem:[%s4 + $0x1d2] sm:$0x4] %vm585, %v558
    %699 = vst.msk [vmem:[%s4 + $0x13] sm:$0x8] %vm598, %v536
    %700 = vst.msk [vmem:[%s4 + $0x33] sm:$0x8] %vm598, %v538
    %701 = vst.msk [vmem:[%s4 + $0x53] sm:$0x8] %vm598, %v540
    %702 = vst.msk [vmem:[%s4 + $0x73] sm:$0x8] %vm598, %v542
    %703 = vst.msk [vmem:[%s4 + $0x93] sm:$0x8] %vm598, %v544
    %704 = vst.msk [vmem:[%s4 + $0xb3] sm:$0x8] %vm598, %v546
    %705 = vst.msk [vmem:[%s4 + $0x133] sm:$0x8] %vm598, %v548
    %706 = vst.msk [vmem:[%s4 + $0x153] sm:$0x8] %vm598, %v550
    %707 = vst.msk [vmem:[%s4 + $0x173] sm:$0x8] %vm598, %v552
    %708 = vst.msk [vmem:[%s4 + $0x193] sm:$0x8] %vm598, %v554
    %709 = vst.msk [vmem:[%s4 + $0x1b3] sm:$0x8] %vm598, %v556
    %710 = vst.msk [vmem:[%s4 + $0x1d3] sm:$0x8] %vm598, %v558
    %711 = vst.msk [vmem:[%s4 + $0x14] sm:$0x10] %vm611, %v536
    %712 = vst.msk [vmem:[%s4 + $0x34] sm:$0x10] %vm611, %v538
    %713 = vst.msk [vmem:[%s4 + $0x54] sm:$0x10] %vm611, %v540
    %714 = vst.msk [vmem:[%s4 + $0x74] sm:$0x10] %vm611, %v542
    %715 = vst.msk [vmem:[%s4 + $0x94] sm:$0x10] %vm611, %v544
    %716 = vst.msk [vmem:[%s4 + $0xb4] sm:$0x10] %vm611, %v546
    %717 = vst.msk [vmem:[%s4 + $0x134] sm:$0x10] %vm611, %v548
    %718 = vst.msk [vmem:[%s4 + $0x154] sm:$0x10] %vm611, %v550
    %719 = vst.msk [vmem:[%s4 + $0x174] sm:$0x10] %vm611, %v552
    %720 = vst.msk [vmem:[%s4 + $0x194] sm:$0x10] %vm611, %v554
    %721 = vst.msk [vmem:[%s4 + $0x1b4] sm:$0x10] %vm611, %v556
    %722 = vst.msk [vmem:[%s4 + $0x1d4] sm:$0x10] %vm611, %v558
    %723 = vst.msk [vmem:[%s4 + $0x15] sm:$0x20] %vm624, %v536
    %724 = vst.msk [vmem:[%s4 + $0x35] sm:$0x20] %vm624, %v538
    %725 = vst.msk [vmem:[%s4 + $0x55] sm:$0x20] %vm624, %v540
    %726 = vst.msk [vmem:[%s4 + $0x75] sm:$0x20] %vm624, %v542
    %727 = vst.msk [vmem:[%s4 + $0x95] sm:$0x20] %vm624, %v544
    %728 = vst.msk [vmem:[%s4 + $0xb5] sm:$0x20] %vm624, %v546
    %729 = vst.msk [vmem:[%s4 + $0x135] sm:$0x20] %vm624, %v548
    %730 = vst.msk [vmem:[%s4 + $0x155] sm:$0x20] %vm624, %v550
    %731 = vst.msk [vmem:[%s4 + $0x175] sm:$0x20] %vm624, %v552
    %732 = vst.msk [vmem:[%s4 + $0x195] sm:$0x20] %vm624, %v554
    %733 = vst.msk [vmem:[%s4 + $0x1b5] sm:$0x20] %vm624, %v556
    %734 = vst.msk [vmem:[%s4 + $0x1d5] sm:$0x20] %vm624, %v558
    %735 = vst.msk [vmem:[%s4 + $0x16] sm:$0x40] %vm637, %v536
    %736 = vst.msk [vmem:[%s4 + $0x36] sm:$0x40] %vm637, %v538
    %737 = vst.msk [vmem:[%s4 + $0x56] sm:$0x40] %vm637, %v540
    %738 = vst.msk [vmem:[%s4 + $0x76] sm:$0x40] %vm637, %v542
    %739 = vst.msk [vmem:[%s4 + $0x96] sm:$0x40] %vm637, %v544
    %740 = vst.msk [vmem:[%s4 + $0xb6] sm:$0x40] %vm637, %v546
    %741 = vst.msk [vmem:[%s4 + $0x136] sm:$0x40] %vm637, %v548
    %742 = vst.msk [vmem:[%s4 + $0x156] sm:$0x40] %vm637, %v550
    %743 = vst.msk [vmem:[%s4 + $0x176] sm:$0x40] %vm637, %v552
    %744 = vst.msk [vmem:[%s4 + $0x196] sm:$0x40] %vm637, %v554
    %745 = vst.msk [vmem:[%s4 + $0x1b6] sm:$0x40] %vm637, %v556
    %746 = vst.msk [vmem:[%s4 + $0x1d6] sm:$0x40] %vm637, %v558
    %747 = vst.msk [vmem:[%s4 + $0x17] sm:$0x80] %vm650, %v536
    %748 = vst.msk [vmem:[%s4 + $0x37] sm:$0x80] %vm650, %v538
    %749 = vst.msk [vmem:[%s4 + $0x57] sm:$0x80] %vm650, %v540
    %750 = vst.msk [vmem:[%s4 + $0x77] sm:$0x80] %vm650, %v542
    %751 = vst.msk [vmem:[%s4 + $0x97] sm:$0x80] %vm650, %v544
    %752 = vst.msk [vmem:[%s4 + $0xb7] sm:$0x80] %vm650, %v546
    %753 = vst.msk [vmem:[%s4 + $0x137] sm:$0x80] %vm650, %v548
    %754 = vst.msk [vmem:[%s4 + $0x157] sm:$0x80] %vm650, %v550
    %755 = vst.msk [vmem:[%s4 + $0x177] sm:$0x80] %vm650, %v552
    %756 = vst.msk [vmem:[%s4 + $0x197] sm:$0x80] %vm650, %v554
    %757 = vst.msk [vmem:[%s4 + $0x1b7] sm:$0x80] %vm650, %v556
    %758 = vst.msk [vmem:[%s4 + $0x1d7] sm:$0x80] %vm650, %v558
    %v759 = vld [vmem:[%s1] sm:$0xff]
    %v760 = vld [vmem:[%s1 + $0x8] sm:$0xff]
    %v761 = vld [vmem:[%s1 + $0x10] sm:$0xff]
    %v762 = vld [vmem:[%s1 + $0x18] sm:$0x7f]
    %v763 = vld [vmem:[%s1 + $0x20] sm:$0xff]
    %v764 = vld [vmem:[%s1 + $0x28] sm:$0xff]
    %v765 = vld [vmem:[%s1 + $0x30] sm:$0xff]
    %v766 = vld [vmem:[%s1 + $0x38] sm:$0x7f]
    %v767 = vld [vmem:[%s1 + $0x40] sm:$0xff]
    %v768 = vld [vmem:[%s1 + $0x48] sm:$0xff]
    %v769 = vld [vmem:[%s1 + $0x50] sm:$0xff]
    %v770 = vld [vmem:[%s1 + $0x58] sm:$0x7f]
    %v771 = vld [vmem:[%s1 + $0x60] sm:$0xff]
    %v772 = vld [vmem:[%s1 + $0x68] sm:$0xff]
    %v773 = vld [vmem:[%s1 + $0x70] sm:$0xff]
    %v774 = vld [vmem:[%s1 + $0x78] sm:$0x7f]
    %v775 = vld [vmem:[%s1 + $0x80] sm:$0xff]
    %v776 = vld [vmem:[%s1 + $0x88] sm:$0xff]
    %v777 = vld [vmem:[%s1 + $0x90] sm:$0xff]
    %v778 = vld [vmem:[%s1 + $0x98] sm:$0x7f]
    %v779 = vld [vmem:[%s1 + $0xa0] sm:$0xff]
    %v780 = vld [vmem:[%s1 + $0xa8] sm:$0xff]
    %v781 = vld [vmem:[%s1 + $0xb0] sm:$0xff]
    %v782 = vld [vmem:[%s1 + $0xb8] sm:$0x7f]
    %s783 = scalar_lea.vmem %s4, 192
    %784 = vst.msk [vmem:[%s783] sm:$0xff] %vm485, %v759
    %785 = vst.msk [vmem:[%s783 + $0x8] sm:$0xff] %vm485, %v760
    %786 = vst.msk [vmem:[%s783 + $0x10] sm:$0xff] %vm485, %v761
    %787 = vst.msk [vmem:[%s783 + $0x18] sm:$0x7f] %vm489, %v762
    %788 = vst.msk [vmem:[%s783 + $0x20] sm:$0xff] %vm485, %v763
    %789 = vst.msk [vmem:[%s783 + $0x28] sm:$0xff] %vm485, %v764
    %790 = vst.msk [vmem:[%s783 + $0x30] sm:$0xff] %vm485, %v765
    %791 = vst.msk [vmem:[%s783 + $0x38] sm:$0x7f] %vm489, %v766
    %792 = vst.msk [vmem:[%s783 + $0x40] sm:$0xff] %vm485, %v767
    %793 = vst.msk [vmem:[%s783 + $0x48] sm:$0xff] %vm485, %v768
    %794 = vst.msk [vmem:[%s783 + $0x50] sm:$0xff] %vm485, %v769
    %795 = vst.msk [vmem:[%s783 + $0x58] sm:$0x7f] %vm489, %v770
    %796 = vst.msk [vmem:[%s783 + $0x120] sm:$0xff] %vm485, %v771
    %797 = vst.msk [vmem:[%s783 + $0x128] sm:$0xff] %vm485, %v772
    %798 = vst.msk [vmem:[%s783 + $0x130] sm:$0xff] %vm485, %v773
    %799 = vst.msk [vmem:[%s783 + $0x138] sm:$0x7f] %vm489, %v774
    %800 = vst.msk [vmem:[%s783 + $0x140] sm:$0xff] %vm485, %v775
    %801 = vst.msk [vmem:[%s783 + $0x148] sm:$0xff] %vm485, %v776
    %802 = vst.msk [vmem:[%s783 + $0x150] sm:$0xff] %vm485, %v777
    %803 = vst.msk [vmem:[%s783 + $0x158] sm:$0x7f] %vm489, %v778
    %804 = vst.msk [vmem:[%s783 + $0x160] sm:$0xff] %vm485, %v779
    %805 = vst.msk [vmem:[%s783 + $0x168] sm:$0xff] %vm485, %v780
    %806 = vst.msk [vmem:[%s783 + $0x170] sm:$0xff] %vm485, %v781
    %807 = vst.msk [vmem:[%s783 + $0x178] sm:$0x7f] %vm489, %v782
    // Predicated region
    $region26: #{tpu_custom_call.1} parent=1 // pred_check
      _
    $region27: #{tpu_custom_call.1} parent=1 // pred_check_branch
      %809 = sbr.rel (0) target = $region29
    $region28: #{tpu_custom_call.1} parent=1 // pred_region
      _
    $region29: #{tpu_custom_call.1} parent=1 // pred_fallthru
      _
    // Predicated region
    $region30: #{tpu_custom_call.1} parent=1 // pred_check
      _
    $region31: #{tpu_custom_call.1} parent=1 // pred_check_branch
      %811 = sbr.rel (0) target = $region33
    $region32: #{tpu_custom_call.1} parent=1 // pred_region
      _
    $region33: #{tpu_custom_call.1} parent=1 // pred_fallthru
      _
    %812 = vsyncpa [#allocation3], 1
    %813 = vsyncpa [#allocation5], 1

</llo_original>
